<compile_context>
chip_gen: v6e
topology: v6e:2x2x1
jax: 0.10.0
libtpu: 0.0.40
codegen_flags: <defaults>
</compile_context>

<pallas_src>
import math

import jax
import jax.numpy as jnp
from jax import lax
from jax.experimental import pallas as pl
from jax.experimental.pallas import tpu as pltpu

# ----------------------------- model config (small) -------------------------
B = 2            # batch
N = 8            # sequence length
D = 32           # embedding dim
HEADS = 4        # attention heads
DH = 8           # dim per head
INNER = HEADS * DH          # 32
MLP = 64         # mlp hidden dim
DEPTH = 2        # number of layers
EPS = 1e-5       # nn.LayerNorm default eps
SCALE = DH ** (-0.5)
INV_SQRT2 = 1.0 / math.sqrt(2.0)

BN = B * N                   # batch folded into rows
MXU_DT = jnp.bfloat16        # matmul operand dtype (f32 accumulation)
NEG_INF = -1e30

_QK_DIMS = (((1,), (1,)), ((), ()))   # contract last dims of q and k (no k.T)


# ----------------------------- kernel ----------------------------------------
def _layer_norm(x, w, b):
    """x: (rows, D) f32; w, b: (1, D) f32."""
    mu = jnp.mean(x, axis=-1, keepdims=True)
    var = jnp.mean((x - mu) ** 2, axis=-1, keepdims=True)
    return (x - mu) * lax.rsqrt(var + EPS) * w + b


def transformer_kernel(
    x_ref,                        # (BN, D)        f32
    bias_ref,                     # (BN, BN)       f32  additive block-diagonal mask
    ln1w_ref, ln1b_ref,           # (DEPTH, 1, D)  f32
    wqkv_ref,                     # (DEPTH, D, 3*INNER) bf16
    wo_ref, bo_ref,               # (DEPTH, INNER, D) bf16, (DEPTH, 1, D) f32
    ln2w_ref, ln2b_ref,           # (DEPTH, 1, D)  f32
    w1_ref, b1_ref,               # (DEPTH, D, MLP) bf16, (DEPTH, 1, MLP) f32
    w2_ref, b2_ref,               # (DEPTH, MLP, D) bf16, (DEPTH, 1, D) f32
    fnw_ref, fnb_ref,             # (1, D) f32 final LayerNorm
    o_ref,                        # (BN, D) f32
):
    x = x_ref[...]                                            # (BN, D) f32
    bias = bias_ref[...]                                      # (BN, BN) f32, hoisted

    for l in range(DEPTH):                                    # statically unrolled
        # ---------------- Attention block ----------------
        xn = _layer_norm(x, ln1w_ref[l], ln1b_ref[l])         # (BN, D) f32

        # Fused QKV projection: one wide MXU matmul, bf16 operands, f32 accumulate.
        qkv = jnp.dot(xn.astype(MXU_DT), wqkv_ref[l],
                      preferred_element_type=jnp.float32)     # (BN, 3*INNER)

        head_outs = []
        for h in range(HEADS):                                # static unrolled, HEADS=4
            q = qkv[:, h * DH:(h + 1) * DH].astype(MXU_DT)
            k = qkv[:, INNER + h * DH:INNER + (h + 1) * DH].astype(MXU_DT)
            v = qkv[:, 2 * INNER + h * DH:2 * INNER + (h + 1) * DH].astype(MXU_DT)

            # q @ k^T without materializing a transpose (transposed contraction).
            dots = lax.dot_general(q, k, _QK_DIMS,
                                   preferred_element_type=jnp.float32) * SCALE
            dots = dots + bias                                # batch-block-diagonal mask
            m = jnp.max(dots, axis=-1, keepdims=True)
            p = jnp.exp(dots - m)
            denom = jnp.sum(p, axis=-1, keepdims=True)
            attn = p * pl.reciprocal(denom, approx=True)      # EUP vrcp
            head_outs.append(jnp.dot(attn.astype(MXU_DT), v,
                                     preferred_element_type=jnp.float32))  # (BN, DH)

        heads = jnp.concatenate(head_outs, axis=-1)           # (BN, INNER), in vregs

        # Fused output projection over concatenated heads + residual.
        proj = jnp.dot(heads.astype(MXU_DT), wo_ref[l],
                       preferred_element_type=jnp.float32) + bo_ref[l]
        x2 = proj + x                                          # (BN, D)

        # ---------------- FeedForward block ----------------
        xn2 = _layer_norm(x2, ln2w_ref[l], ln2b_ref[l])
        h1 = jnp.dot(xn2.astype(MXU_DT), w1_ref[l],
                     preferred_element_type=jnp.float32) + b1_ref[l]      # (BN, MLP)
        g = 0.5 * h1 * (1.0 + lax.erf(h1 * INV_SQRT2))         # exact GELU (nn.GELU default)
        x = jnp.dot(g.astype(MXU_DT), w2_ref[l],
                    preferred_element_type=jnp.float32) + b2_ref[l] + x2  # residual

    # Final LayerNorm, single write of the output tile.
    o_ref[...] = _layer_norm(x, fnw_ref[...], fnb_ref[...]).astype(o_ref.dtype)


# ----------------------------- wrapper ---------------------------------------
_VMEM_SPEC = pl.BlockSpec(memory_space=pltpu.MemorySpace.VMEM)   # full array, resident in VMEM
_NUM_INPUTS = 15


@jax.jit
def transformer_forward(x, params):
    x2d = x.reshape(BN, D)
    mxu = lambda a: a.astype(MXU_DT)

    # Block-diagonal additive bias: 0 within a batch item, -1e30 across items.
    row_b = jnp.arange(BN, dtype=jnp.int32) // N
    bias = jnp.where(row_b[:, None] == row_b[None, :], 0.0, NEG_INF).astype(jnp.float32)

    out2d = pl.pallas_call(
        transformer_kernel,
        out_shape=jax.ShapeDtypeStruct((BN, D), jnp.float32),
        in_specs=[_VMEM_SPEC] * _NUM_INPUTS,
        out_specs=_VMEM_SPEC,
    )(
        x2d,
        bias,
        params["ln1w"], params["ln1b"], mxu(params["wqkv"]),
        mxu(params["wo"]), params["bo"],
        params["ln2w"], params["ln2b"],
        mxu(params["w1"]), params["b1"], mxu(params["w2"]), params["b2"],
        params["normw"], params["normb"],
    )
    return out2d.reshape(B, N, D)


# ----------------------------- params & reference -----------------------------
def init_params(key):
    ks = jax.random.split(key, 10)
    w = lambda k, shape, s=0.05: s * jax.random.normal(k, shape, jnp.float32)
    return dict(
        ln1w=1.0 + 0.1 * jax.random.normal(ks[0], (DEPTH, 1, D), jnp.float32),
        ln1b=0.1 * jax.random.normal(ks[1], (DEPTH, 1, D), jnp.float32),
        wqkv=w(ks[2], (DEPTH, D, 3 * INNER)),
        wo=w(ks[3], (DEPTH, INNER, D)),
        bo=w(ks[4], (DEPTH, 1, D)),
        ln2w=1.0 + 0.1 * jax.random.normal(ks[5], (DEPTH, 1, D), jnp.float32),
        ln2b=0.1 * jax.random.normal(ks[6], (DEPTH, 1, D), jnp.float32),
        w1=w(ks[7], (DEPTH, D, MLP)),
        b1=w(ks[8], (DEPTH, 1, MLP)),
        w2=w(ks[9], (DEPTH, MLP, D)),
        b2=jnp.zeros((DEPTH, 1, D), jnp.float32),
        normw=jnp.ones((1, D), jnp.float32),
        normb=jnp.zeros((1, D), jnp.float32),
    )


def _ref_ln(x, w, b):
    mu = jnp.mean(x, axis=-1, keepdims=True)
    var = jnp.mean((x - mu) ** 2, axis=-1, keepdims=True)
    return (x - mu) / jnp.sqrt(var + EPS) * w + b


def reference_forward(x, p):
    """Pure-JAX float32 reference matching the PyTorch module (dropout=0)."""
    for l in range(DEPTH):
        xn = _ref_ln(x, p["ln1w"][l, 0], p["ln1b"][l, 0])
        qkv = xn @ p["wqkv"][l]                                    # (B, N, 3*INNER)
        q, k, v = jnp.split(qkv, 3, axis=-1)
        to_heads = lambda t: t.reshape(B, N, HEADS, DH).transpose(0, 2, 1, 3)
        q, k, v = map(to_heads, (q, k, v))                         # (B, H, N, DH)
        dots = jnp.einsum("bhnd,bhmd->bhnm", q, k) * SCALE
        attn = jax.nn.softmax(dots, axis=-1)
        o = jnp.einsum("bhnm,bhmd->bhnd", attn, v)
        o = o.transpose(0, 2, 1, 3).reshape(B, N, INNER)
        x = o @ p["wo"][l] + p["bo"][l, 0] + x
        xn2 = _ref_ln(x, p["ln2w"][l, 0], p["ln2b"][l, 0])
        h1 = xn2 @ p["w1"][l] + p["b1"][l, 0]
        g = 0.5 * h1 * (1.0 + lax.erf(h1 * INV_SQRT2))
        x = g @ p["w2"][l] + p["b2"][l, 0] + x
    return _ref_ln(x, p["normw"][0], p["normb"][0])


# ----------------------------- main -------------------------------------------
if __name__ == "__main__":
    key = jax.random.PRNGKey(0)
    kx, kp = jax.random.split(key)
    x = jax.random.normal(kx, (B, N, D), jnp.float32)
    params = init_params(kp)

    out = transformer_forward(x, params)
    out = jax.block_until_ready(out)

    ref = reference_forward(x, params)
    assert out.shape == (B, N, D)
    # Tolerance accounts for bf16 MXU operands (incl. attention matmuls) and
    # approx reciprocal in the softmax denominator; accumulation is f32.
    err = float(jnp.max(jnp.abs(out - ref)))
    assert jnp.allclose(out, ref, atol=2e-2, rtol=2e-2), err

    print("KERNEL_OK")
</pallas_src>

<mosaic_0001>
module attributes {stable_mosaic.version = 11 : i64} {
  func.func @transformer_kernel(%arg0: memref<16x32xf32, #tpu.memory_space<vmem>>, %arg1: memref<16x16xf32, #tpu.memory_space<vmem>>, %arg2: memref<2x1x32xf32, #tpu.memory_space<vmem>>, %arg3: memref<2x1x32xf32, #tpu.memory_space<vmem>>, %arg4: memref<2x32x96xbf16, #tpu.memory_space<vmem>>, %arg5: memref<2x32x32xbf16, #tpu.memory_space<vmem>>, %arg6: memref<2x1x32xf32, #tpu.memory_space<vmem>>, %arg7: memref<2x1x32xf32, #tpu.memory_space<vmem>>, %arg8: memref<2x1x32xf32, #tpu.memory_space<vmem>>, %arg9: memref<2x32x64xbf16, #tpu.memory_space<vmem>>, %arg10: memref<2x1x64xf32, #tpu.memory_space<vmem>>, %arg11: memref<2x64x32xbf16, #tpu.memory_space<vmem>>, %arg12: memref<2x1x32xf32, #tpu.memory_space<vmem>>, %arg13: memref<1x32xf32, #tpu.memory_space<vmem>>, %arg14: memref<1x32xf32, #tpu.memory_space<vmem>>, %arg15: memref<16x32xf32, #tpu.memory_space<vmem>>) attributes {dimension_semantics = [], scalar_prefetch = 0 : i64, scratch_operands = 0 : i64, tpu.core_type = #tpu.core_type<tc>} {
    %c0 = arith.constant 0 : index
    %c0_0 = arith.constant 0 : index
    %0 = vector.load %arg0[%c0, %c0_0] : memref<16x32xf32, #tpu.memory_space<vmem>>, vector<16x32xf32>
    %c0_1 = arith.constant 0 : index
    %c0_2 = arith.constant 0 : index
    %1 = vector.load %arg1[%c0_1, %c0_2] : memref<16x16xf32, #tpu.memory_space<vmem>>, vector<16x16xf32>
    %c0_3 = arith.constant 0 : index
    %c0_4 = arith.constant 0 : index
    %c0_5 = arith.constant 0 : index
    %2 = vector.load %arg2[%c0_3, %c0_4, %c0_5] : memref<2x1x32xf32, #tpu.memory_space<vmem>>, vector<1x1x32xf32>
    %3 = vector.shape_cast %2 : vector<1x1x32xf32> to vector<1x32xf32>
    %c0_6 = arith.constant 0 : index
    %c0_7 = arith.constant 0 : index
    %c0_8 = arith.constant 0 : index
    %4 = vector.load %arg3[%c0_6, %c0_7, %c0_8] : memref<2x1x32xf32, #tpu.memory_space<vmem>>, vector<1x1x32xf32>
    %5 = vector.shape_cast %4 : vector<1x1x32xf32> to vector<1x32xf32>
    %cst = arith.constant dense<0.000000e+00> : vector<16xf32>
    %6 = vector.multi_reduction <add>, %0, %cst [1] : vector<16x32xf32> to vector<16xf32>
    %7 = vector.shape_cast %6 : vector<16xf32> to vector<16x1xf32>
    %cst_9 = arith.constant 3.200000e+01 : f32
    %8 = vector.broadcast %cst_9 : f32 to vector<16x1xf32>
    %9 = arith.divf %7, %8 : vector<16x1xf32>
    %10 = vector.broadcast %9 : vector<16x1xf32> to vector<16x32xf32>
    %11 = arith.subf %0, %10 : vector<16x32xf32>
    %12 = arith.mulf %11, %11 : vector<16x32xf32>
    %cst_10 = arith.constant dense<0.000000e+00> : vector<16xf32>
    %13 = vector.multi_reduction <add>, %12, %cst_10 [1] : vector<16x32xf32> to vector<16xf32>
    %14 = vector.shape_cast %13 : vector<16xf32> to vector<16x1xf32>
    %cst_11 = arith.constant 3.200000e+01 : f32
    %15 = vector.broadcast %cst_11 : f32 to vector<16x1xf32>
    %16 = arith.divf %14, %15 : vector<16x1xf32>
    %17 = vector.broadcast %9 : vector<16x1xf32> to vector<16x32xf32>
    %18 = arith.subf %0, %17 : vector<16x32xf32>
    %cst_12 = arith.constant 9.99999974E-6 : f32
    %19 = vector.broadcast %cst_12 : f32 to vector<16x1xf32>
    %20 = arith.addf %16, %19 : vector<16x1xf32>
    %21 = math.rsqrt %20 : vector<16x1xf32>
    %22 = vector.broadcast %21 : vector<16x1xf32> to vector<16x32xf32>
    %23 = arith.mulf %18, %22 : vector<16x32xf32>
    %24 = vector.broadcast %3 : vector<1x32xf32> to vector<16x32xf32>
    %25 = arith.mulf %23, %24 : vector<16x32xf32>
    %26 = vector.broadcast %5 : vector<1x32xf32> to vector<16x32xf32>
    %27 = arith.addf %25, %26 : vector<16x32xf32>
    %28 = arith.truncf %27 : vector<16x32xf32> to vector<16x32xbf16>
    %c0_13 = arith.constant 0 : index
    %c0_14 = arith.constant 0 : index
    %c0_15 = arith.constant 0 : index
    %29 = vector.load %arg4[%c0_13, %c0_14, %c0_15] : memref<2x32x96xbf16, #tpu.memory_space<vmem>>, vector<1x32x96xbf16>
    %30 = vector.shape_cast %29 : vector<1x32x96xbf16> to vector<32x96xbf16>
    %cst_16 = arith.constant dense<0.000000e+00> : vector<16x96xf32>
    %31 = tpu.matmul %28, %30, %cst_16 {dimension_numbers = #tpu.dot_dimension_numbers<[1], [0], [0], [1], [0, 0, 1, 1], [], []>} : vector<16x32xbf16>, vector<32x96xbf16>, vector<16x96xf32> -> vector<16x96xf32>
    %32 = vector.extract_strided_slice %31 {offsets = [0, 0], sizes = [16, 8], strides = [1, 1]} : vector<16x96xf32> to vector<16x8xf32>
    %33 = arith.truncf %32 : vector<16x8xf32> to vector<16x8xbf16>
    %34 = vector.extract_strided_slice %31 {offsets = [0, 32], sizes = [16, 8], strides = [1, 1]} : vector<16x96xf32> to vector<16x8xf32>
    %35 = arith.truncf %34 : vector<16x8xf32> to vector<16x8xbf16>
    %36 = vector.extract_strided_slice %31 {offsets = [0, 64], sizes = [16, 8], strides = [1, 1]} : vector<16x96xf32> to vector<16x8xf32>
    %37 = arith.truncf %36 : vector<16x8xf32> to vector<16x8xbf16>
    %cst_17 = arith.constant dense<0.000000e+00> : vector<16x16xf32>
    %38 = tpu.matmul %33, %35, %cst_17 {dimension_numbers = #tpu.dot_dimension_numbers<[1], [1], [0], [0], [0, 0, 1, 0], [], []>} : vector<16x8xbf16>, vector<16x8xbf16>, vector<16x16xf32> -> vector<16x16xf32>
    %cst_18 = arith.constant 0.353553385 : f32
    %39 = vector.broadcast %cst_18 : f32 to vector<16x16xf32>
    %40 = arith.mulf %38, %39 : vector<16x16xf32>
    %41 = arith.addf %40, %1 : vector<16x16xf32>
    %cst_19 = arith.constant dense<0xFF800000> : vector<16xf32>
    %42 = vector.multi_reduction <maximumf>, %41, %cst_19 [1] : vector<16x16xf32> to vector<16xf32>
    %43 = vector.shape_cast %42 : vector<16xf32> to vector<16x1xf32>
    %44 = vector.broadcast %43 : vector<16x1xf32> to vector<16x16xf32>
    %45 = arith.subf %41, %44 : vector<16x16xf32>
    %46 = math.exp %45 : vector<16x16xf32>
    %cst_20 = arith.constant dense<0.000000e+00> : vector<16xf32>
    %47 = vector.multi_reduction <add>, %46, %cst_20 [1] : vector<16x16xf32> to vector<16xf32>
    %48 = vector.shape_cast %47 : vector<16xf32> to vector<16x1xf32>
    %49 = tpu.reciprocal %48 {approx = true} : vector<16x1xf32> -> vector<16x1xf32>
    %50 = vector.broadcast %49 : vector<16x1xf32> to vector<16x16xf32>
    %51 = arith.mulf %46, %50 : vector<16x16xf32>
    %52 = arith.truncf %51 : vector<16x16xf32> to vector<16x16xbf16>
    %cst_21 = arith.constant dense<0.000000e+00> : vector<16x8xf32>
    %53 = tpu.matmul %52, %37, %cst_21 {dimension_numbers = #tpu.dot_dimension_numbers<[1], [0], [0], [1], [0, 0, 1, 1], [], []>} : vector<16x16xbf16>, vector<16x8xbf16>, vector<16x8xf32> -> vector<16x8xf32>
    %54 = vector.extract_strided_slice %31 {offsets = [0, 8], sizes = [16, 8], strides = [1, 1]} : vector<16x96xf32> to vector<16x8xf32>
    %55 = arith.truncf %54 : vector<16x8xf32> to vector<16x8xbf16>
    %56 = vector.extract_strided_slice %31 {offsets = [0, 40], sizes = [16, 8], strides = [1, 1]} : vector<16x96xf32> to vector<16x8xf32>
    %57 = arith.truncf %56 : vector<16x8xf32> to vector<16x8xbf16>
    %58 = vector.extract_strided_slice %31 {offsets = [0, 72], sizes = [16, 8], strides = [1, 1]} : vector<16x96xf32> to vector<16x8xf32>
    %59 = arith.truncf %58 : vector<16x8xf32> to vector<16x8xbf16>
    %cst_22 = arith.constant dense<0.000000e+00> : vector<16x16xf32>
    %60 = tpu.matmul %55, %57, %cst_22 {dimension_numbers = #tpu.dot_dimension_numbers<[1], [1], [0], [0], [0, 0, 1, 0], [], []>} : vector<16x8xbf16>, vector<16x8xbf16>, vector<16x16xf32> -> vector<16x16xf32>
    %cst_23 = arith.constant 0.353553385 : f32
    %61 = vector.broadcast %cst_23 : f32 to vector<16x16xf32>
    %62 = arith.mulf %60, %61 : vector<16x16xf32>
    %63 = arith.addf %62, %1 : vector<16x16xf32>
    %cst_24 = arith.constant dense<0xFF800000> : vector<16xf32>
    %64 = vector.multi_reduction <maximumf>, %63, %cst_24 [1] : vector<16x16xf32> to vector<16xf32>
    %65 = vector.shape_cast %64 : vector<16xf32> to vector<16x1xf32>
    %66 = vector.broadcast %65 : vector<16x1xf32> to vector<16x16xf32>
    %67 = arith.subf %63, %66 : vector<16x16xf32>
    %68 = math.exp %67 : vector<16x16xf32>
    %cst_25 = arith.constant dense<0.000000e+00> : vector<16xf32>
    %69 = vector.multi_reduction <add>, %68, %cst_25 [1] : vector<16x16xf32> to vector<16xf32>
    %70 = vector.shape_cast %69 : vector<16xf32> to vector<16x1xf32>
    %71 = tpu.reciprocal %70 {approx = true} : vector<16x1xf32> -> vector<16x1xf32>
    %72 = vector.broadcast %71 : vector<16x1xf32> to vector<16x16xf32>
    %73 = arith.mulf %68, %72 : vector<16x16xf32>
    %74 = arith.truncf %73 : vector<16x16xf32> to vector<16x16xbf16>
    %cst_26 = arith.constant dense<0.000000e+00> : vector<16x8xf32>
    %75 = tpu.matmul %74, %59, %cst_26 {dimension_numbers = #tpu.dot_dimension_numbers<[1], [0], [0], [1], [0, 0, 1, 1], [], []>} : vector<16x16xbf16>, vector<16x8xbf16>, vector<16x8xf32> -> vector<16x8xf32>
    %76 = vector.extract_strided_slice %31 {offsets = [0, 16], sizes = [16, 8], strides = [1, 1]} : vector<16x96xf32> to vector<16x8xf32>
    %77 = arith.truncf %76 : vector<16x8xf32> to vector<16x8xbf16>
    %78 = vector.extract_strided_slice %31 {offsets = [0, 48], sizes = [16, 8], strides = [1, 1]} : vector<16x96xf32> to vector<16x8xf32>
    %79 = arith.truncf %78 : vector<16x8xf32> to vector<16x8xbf16>
    %80 = vector.extract_strided_slice %31 {offsets = [0, 80], sizes = [16, 8], strides = [1, 1]} : vector<16x96xf32> to vector<16x8xf32>
    %81 = arith.truncf %80 : vector<16x8xf32> to vector<16x8xbf16>
    %cst_27 = arith.constant dense<0.000000e+00> : vector<16x16xf32>
    %82 = tpu.matmul %77, %79, %cst_27 {dimension_numbers = #tpu.dot_dimension_numbers<[1], [1], [0], [0], [0, 0, 1, 0], [], []>} : vector<16x8xbf16>, vector<16x8xbf16>, vector<16x16xf32> -> vector<16x16xf32>
    %cst_28 = arith.constant 0.353553385 : f32
    %83 = vector.broadcast %cst_28 : f32 to vector<16x16xf32>
    %84 = arith.mulf %82, %83 : vector<16x16xf32>
    %85 = arith.addf %84, %1 : vector<16x16xf32>
    %cst_29 = arith.constant dense<0xFF800000> : vector<16xf32>
    %86 = vector.multi_reduction <maximumf>, %85, %cst_29 [1] : vector<16x16xf32> to vector<16xf32>
    %87 = vector.shape_cast %86 : vector<16xf32> to vector<16x1xf32>
    %88 = vector.broadcast %87 : vector<16x1xf32> to vector<16x16xf32>
    %89 = arith.subf %85, %88 : vector<16x16xf32>
    %90 = math.exp %89 : vector<16x16xf32>
    %cst_30 = arith.constant dense<0.000000e+00> : vector<16xf32>
    %91 = vector.multi_reduction <add>, %90, %cst_30 [1] : vector<16x16xf32> to vector<16xf32>
    %92 = vector.shape_cast %91 : vector<16xf32> to vector<16x1xf32>
    %93 = tpu.reciprocal %92 {approx = true} : vector<16x1xf32> -> vector<16x1xf32>
    %94 = vector.broadcast %93 : vector<16x1xf32> to vector<16x16xf32>
    %95 = arith.mulf %90, %94 : vector<16x16xf32>
    %96 = arith.truncf %95 : vector<16x16xf32> to vector<16x16xbf16>
    %cst_31 = arith.constant dense<0.000000e+00> : vector<16x8xf32>
    %97 = tpu.matmul %96, %81, %cst_31 {dimension_numbers = #tpu.dot_dimension_numbers<[1], [0], [0], [1], [0, 0, 1, 1], [], []>} : vector<16x16xbf16>, vector<16x8xbf16>, vector<16x8xf32> -> vector<16x8xf32>
    %98 = vector.extract_strided_slice %31 {offsets = [0, 24], sizes = [16, 8], strides = [1, 1]} : vector<16x96xf32> to vector<16x8xf32>
    %99 = arith.truncf %98 : vector<16x8xf32> to vector<16x8xbf16>
    %100 = vector.extract_strided_slice %31 {offsets = [0, 56], sizes = [16, 8], strides = [1, 1]} : vector<16x96xf32> to vector<16x8xf32>
    %101 = arith.truncf %100 : vector<16x8xf32> to vector<16x8xbf16>
    %102 = vector.extract_strided_slice %31 {offsets = [0, 88], sizes = [16, 8], strides = [1, 1]} : vector<16x96xf32> to vector<16x8xf32>
    %103 = arith.truncf %102 : vector<16x8xf32> to vector<16x8xbf16>
    %cst_32 = arith.constant dense<0.000000e+00> : vector<16x16xf32>
    %104 = tpu.matmul %99, %101, %cst_32 {dimension_numbers = #tpu.dot_dimension_numbers<[1], [1], [0], [0], [0, 0, 1, 0], [], []>} : vector<16x8xbf16>, vector<16x8xbf16>, vector<16x16xf32> -> vector<16x16xf32>
    %cst_33 = arith.constant 0.353553385 : f32
    %105 = vector.broadcast %cst_33 : f32 to vector<16x16xf32>
    %106 = arith.mulf %104, %105 : vector<16x16xf32>
    %107 = arith.addf %106, %1 : vector<16x16xf32>
    %cst_34 = arith.constant dense<0xFF800000> : vector<16xf32>
    %108 = vector.multi_reduction <maximumf>, %107, %cst_34 [1] : vector<16x16xf32> to vector<16xf32>
    %109 = vector.shape_cast %108 : vector<16xf32> to vector<16x1xf32>
    %110 = vector.broadcast %109 : vector<16x1xf32> to vector<16x16xf32>
    %111 = arith.subf %107, %110 : vector<16x16xf32>
    %112 = math.exp %111 : vector<16x16xf32>
    %cst_35 = arith.constant dense<0.000000e+00> : vector<16xf32>
    %113 = vector.multi_reduction <add>, %112, %cst_35 [1] : vector<16x16xf32> to vector<16xf32>
    %114 = vector.shape_cast %113 : vector<16xf32> to vector<16x1xf32>
    %115 = tpu.reciprocal %114 {approx = true} : vector<16x1xf32> -> vector<16x1xf32>
    %116 = vector.broadcast %115 : vector<16x1xf32> to vector<16x16xf32>
    %117 = arith.mulf %112, %116 : vector<16x16xf32>
    %118 = arith.truncf %117 : vector<16x16xf32> to vector<16x16xbf16>
    %cst_36 = arith.constant dense<0.000000e+00> : vector<16x8xf32>
    %119 = tpu.matmul %118, %103, %cst_36 {dimension_numbers = #tpu.dot_dimension_numbers<[1], [0], [0], [1], [0, 0, 1, 1], [], []>} : vector<16x16xbf16>, vector<16x8xbf16>, vector<16x8xf32> -> vector<16x8xf32>
    %120 = tpu.concatenate %53, %75, %97, %119 in 1 : vector<16x8xf32>, vector<16x8xf32>, vector<16x8xf32>, vector<16x8xf32> -> vector<16x32xf32>
    %121 = arith.truncf %120 : vector<16x32xf32> to vector<16x32xbf16>
    %c0_37 = arith.constant 0 : index
    %c0_38 = arith.constant 0 : index
    %c0_39 = arith.constant 0 : index
    %122 = vector.load %arg5[%c0_37, %c0_38, %c0_39] : memref<2x32x32xbf16, #tpu.memory_space<vmem>>, vector<1x32x32xbf16>
    %123 = vector.shape_cast %122 : vector<1x32x32xbf16> to vector<32x32xbf16>
    %cst_40 = arith.constant dense<0.000000e+00> : vector<16x32xf32>
    %124 = tpu.matmul %121, %123, %cst_40 {dimension_numbers = #tpu.dot_dimension_numbers<[1], [0], [0], [1], [0, 0, 1, 1], [], []>} : vector<16x32xbf16>, vector<32x32xbf16>, vector<16x32xf32> -> vector<16x32xf32>
    %c0_41 = arith.constant 0 : index
    %c0_42 = arith.constant 0 : index
    %c0_43 = arith.constant 0 : index
    %125 = vector.load %arg6[%c0_41, %c0_42, %c0_43] : memref<2x1x32xf32, #tpu.memory_space<vmem>>, vector<1x1x32xf32>
    %126 = vector.shape_cast %125 : vector<1x1x32xf32> to vector<1x32xf32>
    %127 = vector.broadcast %126 : vector<1x32xf32> to vector<16x32xf32>
    %128 = arith.addf %124, %127 : vector<16x32xf32>
    %129 = arith.addf %128, %0 : vector<16x32xf32>
    %c0_44 = arith.constant 0 : index
    %c0_45 = arith.constant 0 : index
    %c0_46 = arith.constant 0 : index
    %130 = vector.load %arg7[%c0_44, %c0_45, %c0_46] : memref<2x1x32xf32, #tpu.memory_space<vmem>>, vector<1x1x32xf32>
    %131 = vector.shape_cast %130 : vector<1x1x32xf32> to vector<1x32xf32>
    %c0_47 = arith.constant 0 : index
    %c0_48 = arith.constant 0 : index
    %c0_49 = arith.constant 0 : index
    %132 = vector.load %arg8[%c0_47, %c0_48, %c0_49] : memref<2x1x32xf32, #tpu.memory_space<vmem>>, vector<1x1x32xf32>
    %133 = vector.shape_cast %132 : vector<1x1x32xf32> to vector<1x32xf32>
    %cst_50 = arith.constant dense<0.000000e+00> : vector<16xf32>
    %134 = vector.multi_reduction <add>, %129, %cst_50 [1] : vector<16x32xf32> to vector<16xf32>
    %135 = vector.shape_cast %134 : vector<16xf32> to vector<16x1xf32>
    %cst_51 = arith.constant 3.200000e+01 : f32
    %136 = vector.broadcast %cst_51 : f32 to vector<16x1xf32>
    %137 = arith.divf %135, %136 : vector<16x1xf32>
    %138 = vector.broadcast %137 : vector<16x1xf32> to vector<16x32xf32>
    %139 = arith.subf %129, %138 : vector<16x32xf32>
    %140 = arith.mulf %139, %139 : vector<16x32xf32>
    %cst_52 = arith.constant dense<0.000000e+00> : vector<16xf32>
    %141 = vector.multi_reduction <add>, %140, %cst_52 [1] : vector<16x32xf32> to vector<16xf32>
    %142 = vector.shape_cast %141 : vector<16xf32> to vector<16x1xf32>
    %cst_53 = arith.constant 3.200000e+01 : f32
    %143 = vector.broadcast %cst_53 : f32 to vector<16x1xf32>
    %144 = arith.divf %142, %143 : vector<16x1xf32>
    %145 = vector.broadcast %137 : vector<16x1xf32> to vector<16x32xf32>
    %146 = arith.subf %129, %145 : vector<16x32xf32>
    %cst_54 = arith.constant 9.99999974E-6 : f32
    %147 = vector.broadcast %cst_54 : f32 to vector<16x1xf32>
    %148 = arith.addf %144, %147 : vector<16x1xf32>
    %149 = math.rsqrt %148 : vector<16x1xf32>
    %150 = vector.broadcast %149 : vector<16x1xf32> to vector<16x32xf32>
    %151 = arith.mulf %146, %150 : vector<16x32xf32>
    %152 = vector.broadcast %131 : vector<1x32xf32> to vector<16x32xf32>
    %153 = arith.mulf %151, %152 : vector<16x32xf32>
    %154 = vector.broadcast %133 : vector<1x32xf32> to vector<16x32xf32>
    %155 = arith.addf %153, %154 : vector<16x32xf32>
    %156 = arith.truncf %155 : vector<16x32xf32> to vector<16x32xbf16>
    %c0_55 = arith.constant 0 : index
    %c0_56 = arith.constant 0 : index
    %c0_57 = arith.constant 0 : index
    %157 = vector.load %arg9[%c0_55, %c0_56, %c0_57] : memref<2x32x64xbf16, #tpu.memory_space<vmem>>, vector<1x32x64xbf16>
    %158 = vector.shape_cast %157 : vector<1x32x64xbf16> to vector<32x64xbf16>
    %cst_58 = arith.constant dense<0.000000e+00> : vector<16x64xf32>
    %159 = tpu.matmul %156, %158, %cst_58 {dimension_numbers = #tpu.dot_dimension_numbers<[1], [0], [0], [1], [0, 0, 1, 1], [], []>} : vector<16x32xbf16>, vector<32x64xbf16>, vector<16x64xf32> -> vector<16x64xf32>
    %c0_59 = arith.constant 0 : index
    %c0_60 = arith.constant 0 : index
    %c0_61 = arith.constant 0 : index
    %160 = vector.load %arg10[%c0_59, %c0_60, %c0_61] : memref<2x1x64xf32, #tpu.memory_space<vmem>>, vector<1x1x64xf32>
    %161 = vector.shape_cast %160 : vector<1x1x64xf32> to vector<1x64xf32>
    %162 = vector.broadcast %161 : vector<1x64xf32> to vector<16x64xf32>
    %163 = arith.addf %159, %162 : vector<16x64xf32>
    %cst_62 = arith.constant 5.000000e-01 : f32
    %164 = vector.broadcast %cst_62 : f32 to vector<16x64xf32>
    %165 = arith.mulf %164, %163 : vector<16x64xf32>
    %cst_63 = arith.constant 0.707106769 : f32
    %166 = vector.broadcast %cst_63 : f32 to vector<16x64xf32>
    %167 = arith.mulf %163, %166 : vector<16x64xf32>
    %168 = math.erf %167 : vector<16x64xf32>
    %cst_64 = arith.constant 1.000000e+00 : f32
    %169 = vector.broadcast %cst_64 : f32 to vector<16x64xf32>
    %170 = arith.addf %169, %168 : vector<16x64xf32>
    %171 = arith.mulf %165, %170 : vector<16x64xf32>
    %172 = arith.truncf %171 : vector<16x64xf32> to vector<16x64xbf16>
    %c0_65 = arith.constant 0 : index
    %c0_66 = arith.constant 0 : index
    %c0_67 = arith.constant 0 : index
    %173 = vector.load %arg11[%c0_65, %c0_66, %c0_67] : memref<2x64x32xbf16, #tpu.memory_space<vmem>>, vector<1x64x32xbf16>
    %174 = vector.shape_cast %173 : vector<1x64x32xbf16> to vector<64x32xbf16>
    %cst_68 = arith.constant dense<0.000000e+00> : vector<16x32xf32>
    %175 = tpu.matmul %172, %174, %cst_68 {dimension_numbers = #tpu.dot_dimension_numbers<[1], [0], [0], [1], [0, 0, 1, 1], [], []>} : vector<16x64xbf16>, vector<64x32xbf16>, vector<16x32xf32> -> vector<16x32xf32>
    %c0_69 = arith.constant 0 : index
    %c0_70 = arith.constant 0 : index
    %c0_71 = arith.constant 0 : index
    %176 = vector.load %arg12[%c0_69, %c0_70, %c0_71] : memref<2x1x32xf32, #tpu.memory_space<vmem>>, vector<1x1x32xf32>
    %177 = vector.shape_cast %176 : vector<1x1x32xf32> to vector<1x32xf32>
    %178 = vector.broadcast %177 : vector<1x32xf32> to vector<16x32xf32>
    %179 = arith.addf %175, %178 : vector<16x32xf32>
    %180 = arith.addf %179, %129 : vector<16x32xf32>
    %c1 = arith.constant 1 : index
    %c0_72 = arith.constant 0 : index
    %c0_73 = arith.constant 0 : index
    %181 = vector.load %arg2[%c1, %c0_72, %c0_73] : memref<2x1x32xf32, #tpu.memory_space<vmem>>, vector<1x1x32xf32>
    %182 = vector.shape_cast %181 : vector<1x1x32xf32> to vector<1x32xf32>
    %c1_74 = arith.constant 1 : index
    %c0_75 = arith.constant 0 : index
    %c0_76 = arith.constant 0 : index
    %183 = vector.load %arg3[%c1_74, %c0_75, %c0_76] : memref<2x1x32xf32, #tpu.memory_space<vmem>>, vector<1x1x32xf32>
    %184 = vector.shape_cast %183 : vector<1x1x32xf32> to vector<1x32xf32>
    %cst_77 = arith.constant dense<0.000000e+00> : vector<16xf32>
    %185 = vector.multi_reduction <add>, %180, %cst_77 [1] : vector<16x32xf32> to vector<16xf32>
    %186 = vector.shape_cast %185 : vector<16xf32> to vector<16x1xf32>
    %cst_78 = arith.constant 3.200000e+01 : f32
    %187 = vector.broadcast %cst_78 : f32 to vector<16x1xf32>
    %188 = arith.divf %186, %187 : vector<16x1xf32>
    %189 = vector.broadcast %188 : vector<16x1xf32> to vector<16x32xf32>
    %190 = arith.subf %180, %189 : vector<16x32xf32>
    %191 = arith.mulf %190, %190 : vector<16x32xf32>
    %cst_79 = arith.constant dense<0.000000e+00> : vector<16xf32>
    %192 = vector.multi_reduction <add>, %191, %cst_79 [1] : vector<16x32xf32> to vector<16xf32>
    %193 = vector.shape_cast %192 : vector<16xf32> to vector<16x1xf32>
    %cst_80 = arith.constant 3.200000e+01 : f32
    %194 = vector.broadcast %cst_80 : f32 to vector<16x1xf32>
    %195 = arith.divf %193, %194 : vector<16x1xf32>
    %196 = vector.broadcast %188 : vector<16x1xf32> to vector<16x32xf32>
    %197 = arith.subf %180, %196 : vector<16x32xf32>
    %cst_81 = arith.constant 9.99999974E-6 : f32
    %198 = vector.broadcast %cst_81 : f32 to vector<16x1xf32>
    %199 = arith.addf %195, %198 : vector<16x1xf32>
    %200 = math.rsqrt %199 : vector<16x1xf32>
    %201 = vector.broadcast %200 : vector<16x1xf32> to vector<16x32xf32>
    %202 = arith.mulf %197, %201 : vector<16x32xf32>
    %203 = vector.broadcast %182 : vector<1x32xf32> to vector<16x32xf32>
    %204 = arith.mulf %202, %203 : vector<16x32xf32>
    %205 = vector.broadcast %184 : vector<1x32xf32> to vector<16x32xf32>
    %206 = arith.addf %204, %205 : vector<16x32xf32>
    %207 = arith.truncf %206 : vector<16x32xf32> to vector<16x32xbf16>
    %c1_82 = arith.constant 1 : index
    %c0_83 = arith.constant 0 : index
    %c0_84 = arith.constant 0 : index
    %208 = vector.load %arg4[%c1_82, %c0_83, %c0_84] : memref<2x32x96xbf16, #tpu.memory_space<vmem>>, vector<1x32x96xbf16>
    %209 = vector.shape_cast %208 : vector<1x32x96xbf16> to vector<32x96xbf16>
    %cst_85 = arith.constant dense<0.000000e+00> : vector<16x96xf32>
    %210 = tpu.matmul %207, %209, %cst_85 {dimension_numbers = #tpu.dot_dimension_numbers<[1], [0], [0], [1], [0, 0, 1, 1], [], []>} : vector<16x32xbf16>, vector<32x96xbf16>, vector<16x96xf32> -> vector<16x96xf32>
    %211 = vector.extract_strided_slice %210 {offsets = [0, 0], sizes = [16, 8], strides = [1, 1]} : vector<16x96xf32> to vector<16x8xf32>
    %212 = arith.truncf %211 : vector<16x8xf32> to vector<16x8xbf16>
    %213 = vector.extract_strided_slice %210 {offsets = [0, 32], sizes = [16, 8], strides = [1, 1]} : vector<16x96xf32> to vector<16x8xf32>
    %214 = arith.truncf %213 : vector<16x8xf32> to vector<16x8xbf16>
    %215 = vector.extract_strided_slice %210 {offsets = [0, 64], sizes = [16, 8], strides = [1, 1]} : vector<16x96xf32> to vector<16x8xf32>
    %216 = arith.truncf %215 : vector<16x8xf32> to vector<16x8xbf16>
    %cst_86 = arith.constant dense<0.000000e+00> : vector<16x16xf32>
    %217 = tpu.matmul %212, %214, %cst_86 {dimension_numbers = #tpu.dot_dimension_numbers<[1], [1], [0], [0], [0, 0, 1, 0], [], []>} : vector<16x8xbf16>, vector<16x8xbf16>, vector<16x16xf32> -> vector<16x16xf32>
    %cst_87 = arith.constant 0.353553385 : f32
    %218 = vector.broadcast %cst_87 : f32 to vector<16x16xf32>
    %219 = arith.mulf %217, %218 : vector<16x16xf32>
    %220 = arith.addf %219, %1 : vector<16x16xf32>
    %cst_88 = arith.constant dense<0xFF800000> : vector<16xf32>
    %221 = vector.multi_reduction <maximumf>, %220, %cst_88 [1] : vector<16x16xf32> to vector<16xf32>
    %222 = vector.shape_cast %221 : vector<16xf32> to vector<16x1xf32>
    %223 = vector.broadcast %222 : vector<16x1xf32> to vector<16x16xf32>
    %224 = arith.subf %220, %223 : vector<16x16xf32>
    %225 = math.exp %224 : vector<16x16xf32>
    %cst_89 = arith.constant dense<0.000000e+00> : vector<16xf32>
    %226 = vector.multi_reduction <add>, %225, %cst_89 [1] : vector<16x16xf32> to vector<16xf32>
    %227 = vector.shape_cast %226 : vector<16xf32> to vector<16x1xf32>
    %228 = tpu.reciprocal %227 {approx = true} : vector<16x1xf32> -> vector<16x1xf32>
    %229 = vector.broadcast %228 : vector<16x1xf32> to vector<16x16xf32>
    %230 = arith.mulf %225, %229 : vector<16x16xf32>
    %231 = arith.truncf %230 : vector<16x16xf32> to vector<16x16xbf16>
    %cst_90 = arith.constant dense<0.000000e+00> : vector<16x8xf32>
    %232 = tpu.matmul %231, %216, %cst_90 {dimension_numbers = #tpu.dot_dimension_numbers<[1], [0], [0], [1], [0, 0, 1, 1], [], []>} : vector<16x16xbf16>, vector<16x8xbf16>, vector<16x8xf32> -> vector<16x8xf32>
    %233 = vector.extract_strided_slice %210 {offsets = [0, 8], sizes = [16, 8], strides = [1, 1]} : vector<16x96xf32> to vector<16x8xf32>
    %234 = arith.truncf %233 : vector<16x8xf32> to vector<16x8xbf16>
    %235 = vector.extract_strided_slice %210 {offsets = [0, 40], sizes = [16, 8], strides = [1, 1]} : vector<16x96xf32> to vector<16x8xf32>
    %236 = arith.truncf %235 : vector<16x8xf32> to vector<16x8xbf16>
    %237 = vector.extract_strided_slice %210 {offsets = [0, 72], sizes = [16, 8], strides = [1, 1]} : vector<16x96xf32> to vector<16x8xf32>
    %238 = arith.truncf %237 : vector<16x8xf32> to vector<16x8xbf16>
    %cst_91 = arith.constant dense<0.000000e+00> : vector<16x16xf32>
    %239 = tpu.matmul %234, %236, %cst_91 {dimension_numbers = #tpu.dot_dimension_numbers<[1], [1], [0], [0], [0, 0, 1, 0], [], []>} : vector<16x8xbf16>, vector<16x8xbf16>, vector<16x16xf32> -> vector<16x16xf32>
    %cst_92 = arith.constant 0.353553385 : f32
    %240 = vector.broadcast %cst_92 : f32 to vector<16x16xf32>
    %241 = arith.mulf %239, %240 : vector<16x16xf32>
    %242 = arith.addf %241, %1 : vector<16x16xf32>
    %cst_93 = arith.constant dense<0xFF800000> : vector<16xf32>
    %243 = vector.multi_reduction <maximumf>, %242, %cst_93 [1] : vector<16x16xf32> to vector<16xf32>
    %244 = vector.shape_cast %243 : vector<16xf32> to vector<16x1xf32>
    %245 = vector.broadcast %244 : vector<16x1xf32> to vector<16x16xf32>
    %246 = arith.subf %242, %245 : vector<16x16xf32>
    %247 = math.exp %246 : vector<16x16xf32>
    %cst_94 = arith.constant dense<0.000000e+00> : vector<16xf32>
    %248 = vector.multi_reduction <add>, %247, %cst_94 [1] : vector<16x16xf32> to vector<16xf32>
    %249 = vector.shape_cast %248 : vector<16xf32> to vector<16x1xf32>
    %250 = tpu.reciprocal %249 {approx = true} : vector<16x1xf32> -> vector<16x1xf32>
    %251 = vector.broadcast %250 : vector<16x1xf32> to vector<16x16xf32>
    %252 = arith.mulf %247, %251 : vector<16x16xf32>
    %253 = arith.truncf %252 : vector<16x16xf32> to vector<16x16xbf16>
    %cst_95 = arith.constant dense<0.000000e+00> : vector<16x8xf32>
    %254 = tpu.matmul %253, %238, %cst_95 {dimension_numbers = #tpu.dot_dimension_numbers<[1], [0], [0], [1], [0, 0, 1, 1], [], []>} : vector<16x16xbf16>, vector<16x8xbf16>, vector<16x8xf32> -> vector<16x8xf32>
    %255 = vector.extract_strided_slice %210 {offsets = [0, 16], sizes = [16, 8], strides = [1, 1]} : vector<16x96xf32> to vector<16x8xf32>
    %256 = arith.truncf %255 : vector<16x8xf32> to vector<16x8xbf16>
    %257 = vector.extract_strided_slice %210 {offsets = [0, 48], sizes = [16, 8], strides = [1, 1]} : vector<16x96xf32> to vector<16x8xf32>
    %258 = arith.truncf %257 : vector<16x8xf32> to vector<16x8xbf16>
    %259 = vector.extract_strided_slice %210 {offsets = [0, 80], sizes = [16, 8], strides = [1, 1]} : vector<16x96xf32> to vector<16x8xf32>
    %260 = arith.truncf %259 : vector<16x8xf32> to vector<16x8xbf16>
    %cst_96 = arith.constant dense<0.000000e+00> : vector<16x16xf32>
    %261 = tpu.matmul %256, %258, %cst_96 {dimension_numbers = #tpu.dot_dimension_numbers<[1], [1], [0], [0], [0, 0, 1, 0], [], []>} : vector<16x8xbf16>, vector<16x8xbf16>, vector<16x16xf32> -> vector<16x16xf32>
    %cst_97 = arith.constant 0.353553385 : f32
    %262 = vector.broadcast %cst_97 : f32 to vector<16x16xf32>
    %263 = arith.mulf %261, %262 : vector<16x16xf32>
    %264 = arith.addf %263, %1 : vector<16x16xf32>
    %cst_98 = arith.constant dense<0xFF800000> : vector<16xf32>
    %265 = vector.multi_reduction <maximumf>, %264, %cst_98 [1] : vector<16x16xf32> to vector<16xf32>
    %266 = vector.shape_cast %265 : vector<16xf32> to vector<16x1xf32>
    %267 = vector.broadcast %266 : vector<16x1xf32> to vector<16x16xf32>
    %268 = arith.subf %264, %267 : vector<16x16xf32>
    %269 = math.exp %268 : vector<16x16xf32>
    %cst_99 = arith.constant dense<0.000000e+00> : vector<16xf32>
    %270 = vector.multi_reduction <add>, %269, %cst_99 [1] : vector<16x16xf32> to vector<16xf32>
    %271 = vector.shape_cast %270 : vector<16xf32> to vector<16x1xf32>
    %272 = tpu.reciprocal %271 {approx = true} : vector<16x1xf32> -> vector<16x1xf32>
    %273 = vector.broadcast %272 : vector<16x1xf32> to vector<16x16xf32>
    %274 = arith.mulf %269, %273 : vector<16x16xf32>
    %275 = arith.truncf %274 : vector<16x16xf32> to vector<16x16xbf16>
    %cst_100 = arith.constant dense<0.000000e+00> : vector<16x8xf32>
    %276 = tpu.matmul %275, %260, %cst_100 {dimension_numbers = #tpu.dot_dimension_numbers<[1], [0], [0], [1], [0, 0, 1, 1], [], []>} : vector<16x16xbf16>, vector<16x8xbf16>, vector<16x8xf32> -> vector<16x8xf32>
    %277 = vector.extract_strided_slice %210 {offsets = [0, 24], sizes = [16, 8], strides = [1, 1]} : vector<16x96xf32> to vector<16x8xf32>
    %278 = arith.truncf %277 : vector<16x8xf32> to vector<16x8xbf16>
    %279 = vector.extract_strided_slice %210 {offsets = [0, 56], sizes = [16, 8], strides = [1, 1]} : vector<16x96xf32> to vector<16x8xf32>
    %280 = arith.truncf %279 : vector<16x8xf32> to vector<16x8xbf16>
    %281 = vector.extract_strided_slice %210 {offsets = [0, 88], sizes = [16, 8], strides = [1, 1]} : vector<16x96xf32> to vector<16x8xf32>
    %282 = arith.truncf %281 : vector<16x8xf32> to vector<16x8xbf16>
    %cst_101 = arith.constant dense<0.000000e+00> : vector<16x16xf32>
    %283 = tpu.matmul %278, %280, %cst_101 {dimension_numbers = #tpu.dot_dimension_numbers<[1], [1], [0], [0], [0, 0, 1, 0], [], []>} : vector<16x8xbf16>, vector<16x8xbf16>, vector<16x16xf32> -> vector<16x16xf32>
    %cst_102 = arith.constant 0.353553385 : f32
    %284 = vector.broadcast %cst_102 : f32 to vector<16x16xf32>
    %285 = arith.mulf %283, %284 : vector<16x16xf32>
    %286 = arith.addf %285, %1 : vector<16x16xf32>
    %cst_103 = arith.constant dense<0xFF800000> : vector<16xf32>
    %287 = vector.multi_reduction <maximumf>, %286, %cst_103 [1] : vector<16x16xf32> to vector<16xf32>
    %288 = vector.shape_cast %287 : vector<16xf32> to vector<16x1xf32>
    %289 = vector.broadcast %288 : vector<16x1xf32> to vector<16x16xf32>
    %290 = arith.subf %286, %289 : vector<16x16xf32>
    %291 = math.exp %290 : vector<16x16xf32>
    %cst_104 = arith.constant dense<0.000000e+00> : vector<16xf32>
    %292 = vector.multi_reduction <add>, %291, %cst_104 [1] : vector<16x16xf32> to vector<16xf32>
    %293 = vector.shape_cast %292 : vector<16xf32> to vector<16x1xf32>
    %294 = tpu.reciprocal %293 {approx = true} : vector<16x1xf32> -> vector<16x1xf32>
    %295 = vector.broadcast %294 : vector<16x1xf32> to vector<16x16xf32>
    %296 = arith.mulf %291, %295 : vector<16x16xf32>
    %297 = arith.truncf %296 : vector<16x16xf32> to vector<16x16xbf16>
    %cst_105 = arith.constant dense<0.000000e+00> : vector<16x8xf32>
    %298 = tpu.matmul %297, %282, %cst_105 {dimension_numbers = #tpu.dot_dimension_numbers<[1], [0], [0], [1], [0, 0, 1, 1], [], []>} : vector<16x16xbf16>, vector<16x8xbf16>, vector<16x8xf32> -> vector<16x8xf32>
    %299 = tpu.concatenate %232, %254, %276, %298 in 1 : vector<16x8xf32>, vector<16x8xf32>, vector<16x8xf32>, vector<16x8xf32> -> vector<16x32xf32>
    %300 = arith.truncf %299 : vector<16x32xf32> to vector<16x32xbf16>
    %c1_106 = arith.constant 1 : index
    %c0_107 = arith.constant 0 : index
    %c0_108 = arith.constant 0 : index
    %301 = vector.load %arg5[%c1_106, %c0_107, %c0_108] : memref<2x32x32xbf16, #tpu.memory_space<vmem>>, vector<1x32x32xbf16>
    %302 = vector.shape_cast %301 : vector<1x32x32xbf16> to vector<32x32xbf16>
    %cst_109 = arith.constant dense<0.000000e+00> : vector<16x32xf32>
    %303 = tpu.matmul %300, %302, %cst_109 {dimension_numbers = #tpu.dot_dimension_numbers<[1], [0], [0], [1], [0, 0, 1, 1], [], []>} : vector<16x32xbf16>, vector<32x32xbf16>, vector<16x32xf32> -> vector<16x32xf32>
    %c1_110 = arith.constant 1 : index
    %c0_111 = arith.constant 0 : index
    %c0_112 = arith.constant 0 : index
    %304 = vector.load %arg6[%c1_110, %c0_111, %c0_112] : memref<2x1x32xf32, #tpu.memory_space<vmem>>, vector<1x1x32xf32>
    %305 = vector.shape_cast %304 : vector<1x1x32xf32> to vector<1x32xf32>
    %306 = vector.broadcast %305 : vector<1x32xf32> to vector<16x32xf32>
    %307 = arith.addf %303, %306 : vector<16x32xf32>
    %308 = arith.addf %307, %180 : vector<16x32xf32>
    %c1_113 = arith.constant 1 : index
    %c0_114 = arith.constant 0 : index
    %c0_115 = arith.constant 0 : index
    %309 = vector.load %arg7[%c1_113, %c0_114, %c0_115] : memref<2x1x32xf32, #tpu.memory_space<vmem>>, vector<1x1x32xf32>
    %310 = vector.shape_cast %309 : vector<1x1x32xf32> to vector<1x32xf32>
    %c1_116 = arith.constant 1 : index
    %c0_117 = arith.constant 0 : index
    %c0_118 = arith.constant 0 : index
    %311 = vector.load %arg8[%c1_116, %c0_117, %c0_118] : memref<2x1x32xf32, #tpu.memory_space<vmem>>, vector<1x1x32xf32>
    %312 = vector.shape_cast %311 : vector<1x1x32xf32> to vector<1x32xf32>
    %cst_119 = arith.constant dense<0.000000e+00> : vector<16xf32>
    %313 = vector.multi_reduction <add>, %308, %cst_119 [1] : vector<16x32xf32> to vector<16xf32>
    %314 = vector.shape_cast %313 : vector<16xf32> to vector<16x1xf32>
    %cst_120 = arith.constant 3.200000e+01 : f32
    %315 = vector.broadcast %cst_120 : f32 to vector<16x1xf32>
    %316 = arith.divf %314, %315 : vector<16x1xf32>
    %317 = vector.broadcast %316 : vector<16x1xf32> to vector<16x32xf32>
    %318 = arith.subf %308, %317 : vector<16x32xf32>
    %319 = arith.mulf %318, %318 : vector<16x32xf32>
    %cst_121 = arith.constant dense<0.000000e+00> : vector<16xf32>
    %320 = vector.multi_reduction <add>, %319, %cst_121 [1] : vector<16x32xf32> to vector<16xf32>
    %321 = vector.shape_cast %320 : vector<16xf32> to vector<16x1xf32>
    %cst_122 = arith.constant 3.200000e+01 : f32
    %322 = vector.broadcast %cst_122 : f32 to vector<16x1xf32>
    %323 = arith.divf %321, %322 : vector<16x1xf32>
    %324 = vector.broadcast %316 : vector<16x1xf32> to vector<16x32xf32>
    %325 = arith.subf %308, %324 : vector<16x32xf32>
    %cst_123 = arith.constant 9.99999974E-6 : f32
    %326 = vector.broadcast %cst_123 : f32 to vector<16x1xf32>
    %327 = arith.addf %323, %326 : vector<16x1xf32>
    %328 = math.rsqrt %327 : vector<16x1xf32>
    %329 = vector.broadcast %328 : vector<16x1xf32> to vector<16x32xf32>
    %330 = arith.mulf %325, %329 : vector<16x32xf32>
    %331 = vector.broadcast %310 : vector<1x32xf32> to vector<16x32xf32>
    %332 = arith.mulf %330, %331 : vector<16x32xf32>
    %333 = vector.broadcast %312 : vector<1x32xf32> to vector<16x32xf32>
    %334 = arith.addf %332, %333 : vector<16x32xf32>
    %335 = arith.truncf %334 : vector<16x32xf32> to vector<16x32xbf16>
    %c1_124 = arith.constant 1 : index
    %c0_125 = arith.constant 0 : index
    %c0_126 = arith.constant 0 : index
    %336 = vector.load %arg9[%c1_124, %c0_125, %c0_126] : memref<2x32x64xbf16, #tpu.memory_space<vmem>>, vector<1x32x64xbf16>
    %337 = vector.shape_cast %336 : vector<1x32x64xbf16> to vector<32x64xbf16>
    %cst_127 = arith.constant dense<0.000000e+00> : vector<16x64xf32>
    %338 = tpu.matmul %335, %337, %cst_127 {dimension_numbers = #tpu.dot_dimension_numbers<[1], [0], [0], [1], [0, 0, 1, 1], [], []>} : vector<16x32xbf16>, vector<32x64xbf16>, vector<16x64xf32> -> vector<16x64xf32>
    %c1_128 = arith.constant 1 : index
    %c0_129 = arith.constant 0 : index
    %c0_130 = arith.constant 0 : index
    %339 = vector.load %arg10[%c1_128, %c0_129, %c0_130] : memref<2x1x64xf32, #tpu.memory_space<vmem>>, vector<1x1x64xf32>
    %340 = vector.shape_cast %339 : vector<1x1x64xf32> to vector<1x64xf32>
    %341 = vector.broadcast %340 : vector<1x64xf32> to vector<16x64xf32>
    %342 = arith.addf %338, %341 : vector<16x64xf32>
    %cst_131 = arith.constant 5.000000e-01 : f32
    %343 = vector.broadcast %cst_131 : f32 to vector<16x64xf32>
    %344 = arith.mulf %343, %342 : vector<16x64xf32>
    %cst_132 = arith.constant 0.707106769 : f32
    %345 = vector.broadcast %cst_132 : f32 to vector<16x64xf32>
    %346 = arith.mulf %342, %345 : vector<16x64xf32>
    %347 = math.erf %346 : vector<16x64xf32>
    %cst_133 = arith.constant 1.000000e+00 : f32
    %348 = vector.broadcast %cst_133 : f32 to vector<16x64xf32>
    %349 = arith.addf %348, %347 : vector<16x64xf32>
    %350 = arith.mulf %344, %349 : vector<16x64xf32>
    %351 = arith.truncf %350 : vector<16x64xf32> to vector<16x64xbf16>
    %c1_134 = arith.constant 1 : index
    %c0_135 = arith.constant 0 : index
    %c0_136 = arith.constant 0 : index
    %352 = vector.load %arg11[%c1_134, %c0_135, %c0_136] : memref<2x64x32xbf16, #tpu.memory_space<vmem>>, vector<1x64x32xbf16>
    %353 = vector.shape_cast %352 : vector<1x64x32xbf16> to vector<64x32xbf16>
    %cst_137 = arith.constant dense<0.000000e+00> : vector<16x32xf32>
    %354 = tpu.matmul %351, %353, %cst_137 {dimension_numbers = #tpu.dot_dimension_numbers<[1], [0], [0], [1], [0, 0, 1, 1], [], []>} : vector<16x64xbf16>, vector<64x32xbf16>, vector<16x32xf32> -> vector<16x32xf32>
    %c1_138 = arith.constant 1 : index
    %c0_139 = arith.constant 0 : index
    %c0_140 = arith.constant 0 : index
    %355 = vector.load %arg12[%c1_138, %c0_139, %c0_140] : memref<2x1x32xf32, #tpu.memory_space<vmem>>, vector<1x1x32xf32>
    %356 = vector.shape_cast %355 : vector<1x1x32xf32> to vector<1x32xf32>
    %357 = vector.broadcast %356 : vector<1x32xf32> to vector<16x32xf32>
    %358 = arith.addf %354, %357 : vector<16x32xf32>
    %359 = arith.addf %358, %308 : vector<16x32xf32>
    %c0_141 = arith.constant 0 : index
    %c0_142 = arith.constant 0 : index
    %360 = vector.load %arg13[%c0_141, %c0_142] : memref<1x32xf32, #tpu.memory_space<vmem>>, vector<1x32xf32>
    %c0_143 = arith.constant 0 : index
    %c0_144 = arith.constant 0 : index
    %361 = vector.load %arg14[%c0_143, %c0_144] : memref<1x32xf32, #tpu.memory_space<vmem>>, vector<1x32xf32>
    %cst_145 = arith.constant dense<0.000000e+00> : vector<16xf32>
    %362 = vector.multi_reduction <add>, %359, %cst_145 [1] : vector<16x32xf32> to vector<16xf32>
    %363 = vector.shape_cast %362 : vector<16xf32> to vector<16x1xf32>
    %cst_146 = arith.constant 3.200000e+01 : f32
    %364 = vector.broadcast %cst_146 : f32 to vector<16x1xf32>
    %365 = arith.divf %363, %364 : vector<16x1xf32>
    %366 = vector.broadcast %365 : vector<16x1xf32> to vector<16x32xf32>
    %367 = arith.subf %359, %366 : vector<16x32xf32>
    %368 = arith.mulf %367, %367 : vector<16x32xf32>
    %cst_147 = arith.constant dense<0.000000e+00> : vector<16xf32>
    %369 = vector.multi_reduction <add>, %368, %cst_147 [1] : vector<16x32xf32> to vector<16xf32>
    %370 = vector.shape_cast %369 : vector<16xf32> to vector<16x1xf32>
    %cst_148 = arith.constant 3.200000e+01 : f32
    %371 = vector.broadcast %cst_148 : f32 to vector<16x1xf32>
    %372 = arith.divf %370, %371 : vector<16x1xf32>
    %373 = vector.broadcast %365 : vector<16x1xf32> to vector<16x32xf32>
    %374 = arith.subf %359, %373 : vector<16x32xf32>
    %cst_149 = arith.constant 9.99999974E-6 : f32
    %375 = vector.broadcast %cst_149 : f32 to vector<16x1xf32>
    %376 = arith.addf %372, %375 : vector<16x1xf32>
    %377 = math.rsqrt %376 : vector<16x1xf32>
    %378 = vector.broadcast %377 : vector<16x1xf32> to vector<16x32xf32>
    %379 = arith.mulf %374, %378 : vector<16x32xf32>
    %380 = vector.broadcast %360 : vector<1x32xf32> to vector<16x32xf32>
    %381 = arith.mulf %379, %380 : vector<16x32xf32>
    %382 = vector.broadcast %361 : vector<1x32xf32> to vector<16x32xf32>
    %383 = arith.addf %381, %382 : vector<16x32xf32>
    %c0_150 = arith.constant 0 : index
    %c0_151 = arith.constant 0 : index
    %384 = vector.load %arg15[%c0_150, %c0_151] : memref<16x32xf32, #tpu.memory_space<vmem>>, vector<16x32xf32>
    tpu.vector_store %arg15[%c0_150, %c0_151], %383 {strides = array<i32>} : memref<16x32xf32, #tpu.memory_space<vmem>>, vector<16x32xf32>,
    return
  }
}

</mosaic_0001>

<llo_original>
// kernel: transformer_forward.1
$region0: #{transformer_forward.1}
  #allocation0 [shape = 'u32[]', space=smem, size = 0x4, offset = 0x4, fixed_abs, tag = 'smem constant byte address 0x4 - core index']
  #allocation1 [shape = 'u32[144,128]{1,0:T(1,128)}', space=vmem, size = 0x12000, scoped, tag = 'internal scratch']
  %s0 = inlined_call_operand.vmem [shape: f32[16,32], index: 0, kind: input, shape index: {}]
  %s1 = inlined_call_operand.vmem [shape: f32[16,16], index: 1, kind: input, shape index: {}]
  %s2 = inlined_call_operand.vmem [shape: f32[2,1,32], index: 2, kind: input, shape index: {}]
  %s3 = inlined_call_operand.vmem [shape: f32[2,1,32], index: 3, kind: input, shape index: {}]
  %s4 = inlined_call_operand.vmem [shape: bf16[2,32,96], index: 4, kind: input, shape index: {}]
  %s5 = inlined_call_operand.vmem [shape: bf16[2,32,32], index: 5, kind: input, shape index: {}]
  %s6 = inlined_call_operand.vmem [shape: f32[2,1,32], index: 6, kind: input, shape index: {}]
  %s7 = inlined_call_operand.vmem [shape: f32[2,1,32], index: 7, kind: input, shape index: {}]
  %s8 = inlined_call_operand.vmem [shape: f32[2,1,32], index: 8, kind: input, shape index: {}]
  %s9 = inlined_call_operand.vmem [shape: bf16[2,32,64], index: 9, kind: input, shape index: {}]
  %s10 = inlined_call_operand.vmem [shape: f32[2,1,64], index: 10, kind: input, shape index: {}]
  %s11 = inlined_call_operand.vmem [shape: bf16[2,64,32], index: 11, kind: input, shape index: {}]
  %s12 = inlined_call_operand.vmem [shape: f32[2,1,32], index: 12, kind: input, shape index: {}]
  %s13 = inlined_call_operand.vmem [shape: f32[1,32], index: 13, kind: input, shape index: {}]
  %s14 = inlined_call_operand.vmem [shape: f32[1,32], index: 14, kind: input, shape index: {}]
  %s15 = inlined_call_operand.hbm [shape: f32[16,32], index: 15, kind: output, shape index: {}]
  %s16 = sld [smem:[#allocation0]]
  $region70: #{transformer_forward.1} parent=0
    _
  %s18 = ssub.s32 1, %s16
  %s19 = scalar_select 0, %s18, %s16
  $region1: #{transformer_forward.1} parent=0
    #allocation2 [shape = 'u8[8192]{0}', space=vmem, size = 0x2000, scoped, tag = 'output window, operand 0, single buffered']
    #allocation3 [shape = 's32[1]{0}', space=sflag, size = 0x4, scoped, tag = 'scoped memory for transformer_forward.1']
    %20 = vsyncpa [#allocation3], 0
    // Predicated region
    $region2: #{transformer_forward.1} parent=1 // pred_check
      _
    $region3: #{transformer_forward.1} parent=1 // pred_check_branch
      %22 = sbr.rel (0) target = $region5
    $region4: #{transformer_forward.1} parent=1 // pred_region
      _
    $region5: #{transformer_forward.1} parent=1 // pred_fallthru
      _
    // Predicated region
    $region6: #{transformer_forward.1} parent=1 // pred_check
      _
    $region7: #{transformer_forward.1} parent=1 // pred_check_branch
      %24 = sbr.rel (0) target = $region9
    $region8: #{transformer_forward.1} parent=1 // pred_region
      _
    $region9: #{transformer_forward.1} parent=1 // pred_fallthru
      _
    // Predicated region
    $region10: #{transformer_forward.1} parent=1 // pred_check
      _
    $region11: #{transformer_forward.1} parent=1 // pred_check_branch
      %26 = sbr.rel (0) target = $region13
    $region12: #{transformer_forward.1} parent=1 // pred_region
      _
    $region13: #{transformer_forward.1} parent=1 // pred_fallthru
      _
    // Predicated region
    $region14: #{transformer_forward.1} parent=1 // pred_check
      _
    $region15: #{transformer_forward.1} parent=1 // pred_check_branch
      %28 = sbr.rel (0) target = $region17
    $region16: #{transformer_forward.1} parent=1 // pred_region
      _
    $region17: #{transformer_forward.1} parent=1 // pred_fallthru
      _
    // Predicated region
    $region18: #{transformer_forward.1} parent=1 // pred_check
      _
    $region19: #{transformer_forward.1} parent=1 // pred_check_branch
      %30 = sbr.rel (0) target = $region21
    $region20: #{transformer_forward.1} parent=1 // pred_region
      _
    $region21: #{transformer_forward.1} parent=1 // pred_fallthru
      _
    // Predicated region
    $region22: #{transformer_forward.1} parent=1 // pred_check
      _
    $region23: #{transformer_forward.1} parent=1 // pred_check_branch
      %32 = sbr.rel (0) target = $region25
    $region24: #{transformer_forward.1} parent=1 // pred_region
      _
    $region25: #{transformer_forward.1} parent=1 // pred_fallthru
      _
    // Predicated region
    $region26: #{transformer_forward.1} parent=1 // pred_check
      _
    $region27: #{transformer_forward.1} parent=1 // pred_check_branch
      %34 = sbr.rel (0) target = $region29
    $region28: #{transformer_forward.1} parent=1 // pred_region
      _
    $region29: #{transformer_forward.1} parent=1 // pred_fallthru
      _
    // Predicated region
    $region30: #{transformer_forward.1} parent=1 // pred_check
      _
    $region31: #{transformer_forward.1} parent=1 // pred_check_branch
      %36 = sbr.rel (0) target = $region33
    $region32: #{transformer_forward.1} parent=1 // pred_region
      _
    $region33: #{transformer_forward.1} parent=1 // pred_fallthru
      _
    // Predicated region
    $region34: #{transformer_forward.1} parent=1 // pred_check
      _
    $region35: #{transformer_forward.1} parent=1 // pred_check_branch
      %38 = sbr.rel (0) target = $region37
    $region36: #{transformer_forward.1} parent=1 // pred_region
      _
    $region37: #{transformer_forward.1} parent=1 // pred_fallthru
      _
    // Predicated region
    $region38: #{transformer_forward.1} parent=1 // pred_check
      _
    $region39: #{transformer_forward.1} parent=1 // pred_check_branch
      %40 = sbr.rel (0) target = $region41
    $region40: #{transformer_forward.1} parent=1 // pred_region
      _
    $region41: #{transformer_forward.1} parent=1 // pred_fallthru
      _
    // Predicated region
    $region42: #{transformer_forward.1} parent=1 // pred_check
      _
    $region43: #{transformer_forward.1} parent=1 // pred_check_branch
      %42 = sbr.rel (0) target = $region45
    $region44: #{transformer_forward.1} parent=1 // pred_region
      _
    $region45: #{transformer_forward.1} parent=1 // pred_fallthru
      _
    // Predicated region
    $region46: #{transformer_forward.1} parent=1 // pred_check
      _
    $region47: #{transformer_forward.1} parent=1 // pred_check_branch
      %44 = sbr.rel (0) target = $region49
    $region48: #{transformer_forward.1} parent=1 // pred_region
      _
    $region49: #{transformer_forward.1} parent=1 // pred_fallthru
      _
    // Predicated region
    $region50: #{transformer_forward.1} parent=1 // pred_check
      _
    $region51: #{transformer_forward.1} parent=1 // pred_check_branch
      %46 = sbr.rel (0) target = $region53
    $region52: #{transformer_forward.1} parent=1 // pred_region
      _
    $region53: #{transformer_forward.1} parent=1 // pred_fallthru
      _
    // Predicated region
    $region54: #{transformer_forward.1} parent=1 // pred_check
      _
    $region55: #{transformer_forward.1} parent=1 // pred_check_branch
      %48 = sbr.rel (0) target = $region57
    $region56: #{transformer_forward.1} parent=1 // pred_region
      _
    $region57: #{transformer_forward.1} parent=1 // pred_fallthru
      _
    // Predicated region
    $region58: #{transformer_forward.1} parent=1 // pred_check
      _
    $region59: #{transformer_forward.1} parent=1 // pred_check_branch
      %50 = sbr.rel (0) target = $region61
    $region60: #{transformer_forward.1} parent=1 // pred_region
      _
    $region61: #{transformer_forward.1} parent=1 // pred_fallthru
      _
    %v52 = vld [vmem:[%s0] sm:$0xff]
    %v53 = vld [vmem:[%s0 + $0x8] sm:$0xff]
    %v54 = vld [vmem:[%s1] sm:$0xff]
    %v55 = vld [vmem:[%s1 + $0x8] sm:$0xff]
    %v56 = vld [vmem:[%s2] sm:$0x1]
    %v57 = vld [vmem:[%s3] sm:$0x1]
    %vm58 = vcmask 261120
    %v59 = vsel %vm58, %v52, 0.0
    %60 = vadd.xlane.f32.xlu0 %v59
    %v61 = vpop.xlane.xlu0 %60
    %v62 = vsel %vm58, %v53, 0.0
    %63 = vadd.xlane.f32.xlu0 %v62
    %v64 = vpop.xlane.xlu0 %63
    %v65 = vrcp.pop 32.0
    %v66 = vmul.f32 %v61, %v65
    %v67 = vmul.f32 %v64, %v65
    %v68 = vsub.f32 %v52, %v66
    %v69 = vsub.f32 %v53, %v67
    %v70 = vmul.f32 %v68, %v68
    %v71 = vmul.f32 %v69, %v69
    %v72 = vsel %vm58, %v70, 0.0
    %73 = vadd.xlane.f32.xlu0 %v72
    %v74 = vpop.xlane.xlu0 %73
    %v75 = vsel %vm58, %v71, 0.0
    %76 = vadd.xlane.f32.xlu0 %v75
    %v77 = vpop.xlane.xlu0 %76
    %v78 = vmul.f32 %v74, %v65
    %v79 = vmul.f32 %v77, %v65
    %v80 = vadd.f32 %v78, 1e-05
    %v81 = vadd.f32 %v79, 1e-05
    %v82 = vrsqrt.pop %v80
    %v83 = vrsqrt.pop %v81
    %v84 = vmul.f32 %v68, %v82
    %v85 = vmul.f32 %v69, %v83
    %v87 = vlaneseq
    %v88 = vshrl.u32 %v87, 7
    %v89 = vsub.s32 0, %v88
    %v90 = vrot.slane %v56, %v89
    %v92 = vmul.f32 %v84, %v90
    %v93 = vmul.f32 %v85, %v90
    %v95 = vlaneseq
    %v96 = vshrl.u32 %v95, 7
    %v97 = vsub.s32 0, %v96
    %v98 = vrot.slane %v57, %v97
    %v100 = vadd.f32 %v92, %v98
    %v101 = vadd.f32 %v93, %v98
    %v102 = vpack.c.bf16 %v101, %v100
    %v103 = vld [vmem:[%s4] sm:$0xf]
    %v104 = vld [vmem:[%s4 + $0x4] sm:$0xf]
    %v105 = vld [vmem:[%s4 + $0x8] sm:$0xf]
    %v106 = vld [vmem:[%s4 + $0xc] sm:$0xf]
    %v111 = vunpack.c.l.b16 %v103
    %v112 = vunpack.c.l.b16 %v104
    %v113 = vunpack.c.l.b16 %v105
    %v114 = vunpack.c.l.b16 %v106
    %v115 = vpack.c.b16 %v112, %v111
    %v116 = vpack.c.b16 %v114, %v113
    %v120 = vsel %vm58, %v102, 0
    %122 = vmatprep.subr.bf16.mxu0 0
    %123 = vmatpush1.bf16.msra.mxu0 0
    %124 = vmatprep.subr.bf16.mxu0 0
    %125 = vmatpush1.bf16.msra.mxu0 0
    %126 = vmatprep.subr.bf16.mxu0 0
    %127 = vmatpush1.bf16.msra.mxu0 0
    %128 = vmatprep.subr.bf16.mxu0 0
    %129 = vmatpush1.bf16.msra.mxu0 0
    %130 = vmatprep.subr.bf16.mxu0 0
    %131 = vmatpush1.bf16.msra.mxu0 0
    %132 = vmatprep.subr.bf16.mxu0 0
    %133 = vmatpush1.bf16.msra.mxu0 0
    %134 = vmatprep.subr.bf16.mxu0 0
    %135 = vmatpush1.bf16.msra.mxu0 %v116
    %136 = vmatprep.subr.bf16.mxu0 0
    %137 = vmatpush1.bf16.msra.mxu0 %v115
    %138 = vmatprep.subr.bf16.mxu0 0
    %139 = vmatpush2.bf16.msra.mxu0 0
    %140 = vmatprep.subr.bf16.mxu0 0
    %141 = vmatpush2.bf16.msra.mxu0 0
    %142 = vmatprep.subr.bf16.mxu0 0
    %143 = vmatpush2.bf16.msra.mxu0 0
    %144 = vmatprep.subr.bf16.mxu0 0
    %145 = vmatpush2.bf16.msra.mxu0 0
    %146 = vmatprep.subr.bf16.mxu0 0
    %147 = vmatpush2.bf16.msra.mxu0 0
    %148 = vmatprep.subr.bf16.mxu0 0
    %149 = vmatpush2.bf16.msra.mxu0 0
    %150 = vmatprep.subr.bf16.mxu0 0
    %151 = vmatpush2.bf16.msra.mxu0 0
    %152 = vmatprep.subr.bf16.mxu0 0
    %153 = vmatpush2.bf16.msra.mxu0 0
    %154 = vmatprep.mubr.bf16.mxu0 0
    %155 = vmatmul.mubr.bf16.gmra.mxu0 %v120
    %v156 = vpop.f32.mrf.mxu0
    %v157 = vadd.f32 0.0, %v156
    %v158 = vpop.f32.mrf.mxu0
    %v159 = vpop.f32.mrf.mxu0
    %v160 = vadd.f32 0.0, %v159
    %v161 = vpop.f32.mrf.mxu0
    %162 = vdwg.mxu0
    %v163 = vpack.c.bf16 %v160, %v157
    %165 = vrot.lane.b32.xlu0 %v163, 96
    %v166 = vpop.permute.xlu0 %165
    %vm167 = vcmask 64512
    %v169 = vsel %vm167, %v163, 0
    %v172 = vsel %vm167, %v166, 0
    %174 = vmatprep.subr.bf16.mxu0 0
    %175 = vmatpush1.bf16.xpose.msra.mxu0 0
    %176 = vmatprep.subr.bf16.mxu0 0
    %177 = vmatpush1.bf16.xpose.msra.mxu0 0
    %178 = vmatprep.subr.bf16.mxu0 0
    %179 = vmatpush1.bf16.xpose.msra.mxu0 0
    %180 = vmatprep.subr.bf16.mxu0 0
    %181 = vmatpush1.bf16.xpose.msra.mxu0 0
    %182 = vmatprep.subr.bf16.mxu0 0
    %183 = vmatpush1.bf16.xpose.msra.mxu0 0
    %184 = vmatprep.subr.bf16.mxu0 0
    %185 = vmatpush1.bf16.xpose.msra.mxu0 0
    %186 = vmatprep.subr.bf16.mxu0 0
    %187 = vmatpush1.bf16.xpose.msra.mxu0 0
    %188 = vmatprep.subr.bf16.mxu0 0
    %189 = vmatpush1.bf16.xpose.msra.mxu0 %v172
    %190 = vmatprep.subr.bf16.mxu0 0
    %191 = vmatpush2.bf16.xpose.msra.mxu0 0
    %192 = vmatprep.subr.bf16.mxu0 0
    %193 = vmatpush2.bf16.xpose.msra.mxu0 0
    %194 = vmatprep.subr.bf16.mxu0 0
    %195 = vmatpush2.bf16.xpose.msra.mxu0 0
    %196 = vmatprep.subr.bf16.mxu0 0
    %197 = vmatpush2.bf16.xpose.msra.mxu0 0
    %198 = vmatprep.subr.bf16.mxu0 0
    %199 = vmatpush2.bf16.xpose.msra.mxu0 0
    %200 = vmatprep.subr.bf16.mxu0 0
    %201 = vmatpush2.bf16.xpose.msra.mxu0 0
    %202 = vmatprep.subr.bf16.mxu0 0
    %203 = vmatpush2.bf16.xpose.msra.mxu0 0
    %204 = vmatprep.subr.bf16.mxu0 0
    %205 = vmatpush2.bf16.xpose.msra.mxu0 0
    %206 = vmatprep.mubr.bf16.mxu0 0
    %207 = vmatmul.mubr.bf16.gmra.mxu0 %v169
    %v208 = vpop.f32.mrf.mxu0
    %v209 = vadd.f32 0.0, %v208
    %v210 = vpop.f32.mrf.mxu0
    %v211 = vpop.f32.mrf.mxu0
    %v212 = vadd.f32 0.0, %v211
    %v213 = vpop.f32.mrf.mxu0
    %214 = vdwg.mxu0
    %v215 = vmul.f32 %v209, 0.35355338
    %v216 = vmul.f32 %v212, 0.35355338
    %v217 = vadd.f32 %v215, %v54
    %v218 = vadd.f32 %v216, %v55
    %vm219 = vcmask 130048
    %v220 = vsel %vm219, %v217, -inf
    %221 = vmax.xlane.f32.xlu0 %v220
    %v222 = vpop.xlane.xlu0 %221
    %v223 = vsel %vm219, %v218, -inf
    %224 = vmax.xlane.f32.xlu0 %v223
    %v225 = vpop.xlane.xlu0 %224
    %v226 = vsub.f32 %v217, %v222
    %v227 = vsub.f32 %v218, %v225
    %v228 = vmul.f32 %v226, 1.442695
    %v229 = vpow.pop %v228
    %v230 = vmul.f32 %v227, 1.442695
    %v231 = vpow.pop %v230
    %v232 = vsel %vm219, %v229, 0.0
    %233 = vadd.xlane.f32.xlu0 %v232
    %v234 = vpop.xlane.xlu0 %233
    %v235 = vsel %vm219, %v231, 0.0
    %236 = vadd.xlane.f32.xlu0 %v235
    %v237 = vpop.xlane.xlu0 %236
    %v238 = vrcp.pop %v234
    %v239 = vrcp.pop %v237
    %v240 = vmul.f32 %v229, %v238
    %v241 = vmul.f32 %v231, %v239
    %v242 = vpack.c.bf16 %v241, %v240
    %243 = vrot.lane.b32.xlu0 %v163, 64
    %v244 = vpop.permute.xlu0 %243
    %v247 = vsel %vm219, %v242, 0
    %249 = vmatprep.subr.bf16.mxu0 0
    %250 = vmatpush1.bf16.msra.mxu0 0
    %251 = vmatprep.subr.bf16.mxu0 0
    %252 = vmatpush1.bf16.msra.mxu0 0
    %253 = vmatprep.subr.bf16.mxu0 0
    %254 = vmatpush1.bf16.msra.mxu0 0
    %255 = vmatprep.subr.bf16.mxu0 0
    %256 = vmatpush1.bf16.msra.mxu0 0
    %257 = vmatprep.subr.bf16.mxu0 0
    %258 = vmatpush1.bf16.msra.mxu0 0
    %259 = vmatprep.subr.bf16.mxu0 0
    %260 = vmatpush1.bf16.msra.mxu0 0
    %261 = vmatprep.subr.bf16.mxu0 0
    %262 = vmatpush1.bf16.msra.mxu0 0
    %263 = vmatprep.subr.bf16.mxu0 0
    %264 = vmatpush1.bf16.msra.mxu0 %v244
    %265 = vmatprep.subr.bf16.mxu0 0
    %266 = vmatpush2.bf16.msra.mxu0 0
    %267 = vmatprep.subr.bf16.mxu0 0
    %268 = vmatpush2.bf16.msra.mxu0 0
    %269 = vmatprep.subr.bf16.mxu0 0
    %270 = vmatpush2.bf16.msra.mxu0 0
    %271 = vmatprep.subr.bf16.mxu0 0
    %272 = vmatpush2.bf16.msra.mxu0 0
    %273 = vmatprep.subr.bf16.mxu0 0
    %274 = vmatpush2.bf16.msra.mxu0 0
    %275 = vmatprep.subr.bf16.mxu0 0
    %276 = vmatpush2.bf16.msra.mxu0 0
    %277 = vmatprep.subr.bf16.mxu0 0
    %278 = vmatpush2.bf16.msra.mxu0 0
    %279 = vmatprep.subr.bf16.mxu0 0
    %280 = vmatpush2.bf16.msra.mxu0 0
    %281 = vmatprep.mubr.bf16.mxu0 0
    %282 = vmatmul.mubr.bf16.gmra.mxu0 %v247
    %v283 = vpop.f32.mrf.mxu0
    %v284 = vadd.f32 0.0, %v283
    %v285 = vpop.f32.mrf.mxu0
    %v286 = vpop.f32.mrf.mxu0
    %v287 = vadd.f32 0.0, %v286
    %v288 = vpop.f32.mrf.mxu0
    %289 = vdwg.mxu0
    %290 = vrot.lane.b32.xlu0 %v163, 120
    %v291 = vpop.permute.xlu0 %290
    %292 = vrot.lane.b32.xlu0 %v163, 88
    %v293 = vpop.permute.xlu0 %292
    %v295 = vsel %vm167, %v291, 0
    %v298 = vsel %vm167, %v293, 0
    %300 = vmatprep.subr.bf16.mxu0 0
    %301 = vmatpush1.bf16.xpose.msra.mxu0 0
    %302 = vmatprep.subr.bf16.mxu0 0
    %303 = vmatpush1.bf16.xpose.msra.mxu0 0
    %304 = vmatprep.subr.bf16.mxu0 0
    %305 = vmatpush1.bf16.xpose.msra.mxu0 0
    %306 = vmatprep.subr.bf16.mxu0 0
    %307 = vmatpush1.bf16.xpose.msra.mxu0 0
    %308 = vmatprep.subr.bf16.mxu0 0
    %309 = vmatpush1.bf16.xpose.msra.mxu0 0
    %310 = vmatprep.subr.bf16.mxu0 0
    %311 = vmatpush1.bf16.xpose.msra.mxu0 0
    %312 = vmatprep.subr.bf16.mxu0 0
    %313 = vmatpush1.bf16.xpose.msra.mxu0 0
    %314 = vmatprep.subr.bf16.mxu0 0
    %315 = vmatpush1.bf16.xpose.msra.mxu0 %v298
    %316 = vmatprep.subr.bf16.mxu0 0
    %317 = vmatpush2.bf16.xpose.msra.mxu0 0
    %318 = vmatprep.subr.bf16.mxu0 0
    %319 = vmatpush2.bf16.xpose.msra.mxu0 0
    %320 = vmatprep.subr.bf16.mxu0 0
    %321 = vmatpush2.bf16.xpose.msra.mxu0 0
    %322 = vmatprep.subr.bf16.mxu0 0
    %323 = vmatpush2.bf16.xpose.msra.mxu0 0
    %324 = vmatprep.subr.bf16.mxu0 0
    %325 = vmatpush2.bf16.xpose.msra.mxu0 0
    %326 = vmatprep.subr.bf16.mxu0 0
    %327 = vmatpush2.bf16.xpose.msra.mxu0 0
    %328 = vmatprep.subr.bf16.mxu0 0
    %329 = vmatpush2.bf16.xpose.msra.mxu0 0
    %330 = vmatprep.subr.bf16.mxu0 0
    %331 = vmatpush2.bf16.xpose.msra.mxu0 0
    %332 = vmatprep.mubr.bf16.mxu0 0
    %333 = vmatmul.mubr.bf16.gmra.mxu0 %v295
    %v334 = vpop.f32.mrf.mxu0
    %v335 = vadd.f32 0.0, %v334
    %v336 = vpop.f32.mrf.mxu0
    %v337 = vpop.f32.mrf.mxu0
    %v338 = vadd.f32 0.0, %v337
    %v339 = vpop.f32.mrf.mxu0
    %340 = vdwg.mxu0
    %v341 = vmul.f32 %v335, 0.35355338
    %v342 = vmul.f32 %v338, 0.35355338
    %v343 = vadd.f32 %v341, %v54
    %v344 = vadd.f32 %v342, %v55
    %v345 = vsel %vm219, %v343, -inf
    %346 = vmax.xlane.f32.xlu0 %v345
    %v347 = vpop.xlane.xlu0 %346
    %v348 = vsel %vm219, %v344, -inf
    %349 = vmax.xlane.f32.xlu0 %v348
    %v350 = vpop.xlane.xlu0 %349
    %v351 = vsub.f32 %v343, %v347
    %v352 = vsub.f32 %v344, %v350
    %v353 = vmul.f32 %v351, 1.442695
    %v354 = vpow.pop %v353
    %v355 = vmul.f32 %v352, 1.442695
    %v356 = vpow.pop %v355
    %v357 = vsel %vm219, %v354, 0.0
    %358 = vadd.xlane.f32.xlu0 %v357
    %v359 = vpop.xlane.xlu0 %358
    %v360 = vsel %vm219, %v356, 0.0
    %361 = vadd.xlane.f32.xlu0 %v360
    %v362 = vpop.xlane.xlu0 %361
    %v363 = vrcp.pop %v359
    %v364 = vrcp.pop %v362
    %v365 = vmul.f32 %v354, %v363
    %v366 = vmul.f32 %v356, %v364
    %v367 = vpack.c.bf16 %v366, %v365
    %368 = vrot.lane.b32.xlu0 %v163, 56
    %v369 = vpop.permute.xlu0 %368
    %v372 = vsel %vm219, %v367, 0
    %374 = vmatprep.subr.bf16.mxu0 0
    %375 = vmatpush1.bf16.msra.mxu0 0
    %376 = vmatprep.subr.bf16.mxu0 0
    %377 = vmatpush1.bf16.msra.mxu0 0
    %378 = vmatprep.subr.bf16.mxu0 0
    %379 = vmatpush1.bf16.msra.mxu0 0
    %380 = vmatprep.subr.bf16.mxu0 0
    %381 = vmatpush1.bf16.msra.mxu0 0
    %382 = vmatprep.subr.bf16.mxu0 0
    %383 = vmatpush1.bf16.msra.mxu0 0
    %384 = vmatprep.subr.bf16.mxu0 0
    %385 = vmatpush1.bf16.msra.mxu0 0
    %386 = vmatprep.subr.bf16.mxu0 0
    %387 = vmatpush1.bf16.msra.mxu0 0
    %388 = vmatprep.subr.bf16.mxu0 0
    %389 = vmatpush1.bf16.msra.mxu0 %v369
    %390 = vmatprep.subr.bf16.mxu0 0
    %391 = vmatpush2.bf16.msra.mxu0 0
    %392 = vmatprep.subr.bf16.mxu0 0
    %393 = vmatpush2.bf16.msra.mxu0 0
    %394 = vmatprep.subr.bf16.mxu0 0
    %395 = vmatpush2.bf16.msra.mxu0 0
    %396 = vmatprep.subr.bf16.mxu0 0
    %397 = vmatpush2.bf16.msra.mxu0 0
    %398 = vmatprep.subr.bf16.mxu0 0
    %399 = vmatpush2.bf16.msra.mxu0 0
    %400 = vmatprep.subr.bf16.mxu0 0
    %401 = vmatpush2.bf16.msra.mxu0 0
    %402 = vmatprep.subr.bf16.mxu0 0
    %403 = vmatpush2.bf16.msra.mxu0 0
    %404 = vmatprep.subr.bf16.mxu0 0
    %405 = vmatpush2.bf16.msra.mxu0 0
    %406 = vmatprep.mubr.bf16.mxu0 0
    %407 = vmatmul.mubr.bf16.gmra.mxu0 %v372
    %v408 = vpop.f32.mrf.mxu0
    %v409 = vadd.f32 0.0, %v408
    %v410 = vpop.f32.mrf.mxu0
    %v411 = vpop.f32.mrf.mxu0
    %v412 = vadd.f32 0.0, %v411
    %v413 = vpop.f32.mrf.mxu0
    %414 = vdwg.mxu0
    %415 = vrot.lane.b32.xlu0 %v163, 112
    %v416 = vpop.permute.xlu0 %415
    %417 = vrot.lane.b32.xlu0 %v163, 80
    %v418 = vpop.permute.xlu0 %417
    %v420 = vsel %vm167, %v416, 0
    %v423 = vsel %vm167, %v418, 0
    %425 = vmatprep.subr.bf16.mxu0 0
    %426 = vmatpush1.bf16.xpose.msra.mxu0 0
    %427 = vmatprep.subr.bf16.mxu0 0
    %428 = vmatpush1.bf16.xpose.msra.mxu0 0
    %429 = vmatprep.subr.bf16.mxu0 0
    %430 = vmatpush1.bf16.xpose.msra.mxu0 0
    %431 = vmatprep.subr.bf16.mxu0 0
    %432 = vmatpush1.bf16.xpose.msra.mxu0 0
    %433 = vmatprep.subr.bf16.mxu0 0
    %434 = vmatpush1.bf16.xpose.msra.mxu0 0
    %435 = vmatprep.subr.bf16.mxu0 0
    %436 = vmatpush1.bf16.xpose.msra.mxu0 0
    %437 = vmatprep.subr.bf16.mxu0 0
    %438 = vmatpush1.bf16.xpose.msra.mxu0 0
    %439 = vmatprep.subr.bf16.mxu0 0
    %440 = vmatpush1.bf16.xpose.msra.mxu0 %v423
    %441 = vmatprep.subr.bf16.mxu0 0
    %442 = vmatpush2.bf16.xpose.msra.mxu0 0
    %443 = vmatprep.subr.bf16.mxu0 0
    %444 = vmatpush2.bf16.xpose.msra.mxu0 0
    %445 = vmatprep.subr.bf16.mxu0 0
    %446 = vmatpush2.bf16.xpose.msra.mxu0 0
    %447 = vmatprep.subr.bf16.mxu0 0
    %448 = vmatpush2.bf16.xpose.msra.mxu0 0
    %449 = vmatprep.subr.bf16.mxu0 0
    %450 = vmatpush2.bf16.xpose.msra.mxu0 0
    %451 = vmatprep.subr.bf16.mxu0 0
    %452 = vmatpush2.bf16.xpose.msra.mxu0 0
    %453 = vmatprep.subr.bf16.mxu0 0
    %454 = vmatpush2.bf16.xpose.msra.mxu0 0
    %455 = vmatprep.subr.bf16.mxu0 0
    %456 = vmatpush2.bf16.xpose.msra.mxu0 0
    %457 = vmatprep.mubr.bf16.mxu0 0
    %458 = vmatmul.mubr.bf16.gmra.mxu0 %v420
    %v459 = vpop.f32.mrf.mxu0
    %v460 = vadd.f32 0.0, %v459
    %v461 = vpop.f32.mrf.mxu0
    %v462 = vpop.f32.mrf.mxu0
    %v463 = vadd.f32 0.0, %v462
    %v464 = vpop.f32.mrf.mxu0
    %465 = vdwg.mxu0
    %v466 = vmul.f32 %v460, 0.35355338
    %v467 = vmul.f32 %v463, 0.35355338
    %v468 = vadd.f32 %v466, %v54
    %v469 = vadd.f32 %v467, %v55
    %v470 = vsel %vm219, %v468, -inf
    %471 = vmax.xlane.f32.xlu0 %v470
    %v472 = vpop.xlane.xlu0 %471
    %v473 = vsel %vm219, %v469, -inf
    %474 = vmax.xlane.f32.xlu0 %v473
    %v475 = vpop.xlane.xlu0 %474
    %v476 = vsub.f32 %v468, %v472
    %v477 = vsub.f32 %v469, %v475
    %v478 = vmul.f32 %v476, 1.442695
    %v479 = vpow.pop %v478
    %v480 = vmul.f32 %v477, 1.442695
    %v481 = vpow.pop %v480
    %v482 = vsel %vm219, %v479, 0.0
    %483 = vadd.xlane.f32.xlu0 %v482
    %v484 = vpop.xlane.xlu0 %483
    %v485 = vsel %vm219, %v481, 0.0
    %486 = vadd.xlane.f32.xlu0 %v485
    %v487 = vpop.xlane.xlu0 %486
    %v488 = vrcp.pop %v484
    %v489 = vrcp.pop %v487
    %v490 = vmul.f32 %v479, %v488
    %v491 = vmul.f32 %v481, %v489
    %v492 = vpack.c.bf16 %v491, %v490
    %493 = vrot.lane.b32.xlu0 %v163, 48
    %v494 = vpop.permute.xlu0 %493
    %v497 = vsel %vm219, %v492, 0
    %499 = vmatprep.subr.bf16.mxu0 0
    %500 = vmatpush1.bf16.msra.mxu0 0
    %501 = vmatprep.subr.bf16.mxu0 0
    %502 = vmatpush1.bf16.msra.mxu0 0
    %503 = vmatprep.subr.bf16.mxu0 0
    %504 = vmatpush1.bf16.msra.mxu0 0
    %505 = vmatprep.subr.bf16.mxu0 0
    %506 = vmatpush1.bf16.msra.mxu0 0
    %507 = vmatprep.subr.bf16.mxu0 0
    %508 = vmatpush1.bf16.msra.mxu0 0
    %509 = vmatprep.subr.bf16.mxu0 0
    %510 = vmatpush1.bf16.msra.mxu0 0
    %511 = vmatprep.subr.bf16.mxu0 0
    %512 = vmatpush1.bf16.msra.mxu0 0
    %513 = vmatprep.subr.bf16.mxu0 0
    %514 = vmatpush1.bf16.msra.mxu0 %v494
    %515 = vmatprep.subr.bf16.mxu0 0
    %516 = vmatpush2.bf16.msra.mxu0 0
    %517 = vmatprep.subr.bf16.mxu0 0
    %518 = vmatpush2.bf16.msra.mxu0 0
    %519 = vmatprep.subr.bf16.mxu0 0
    %520 = vmatpush2.bf16.msra.mxu0 0
    %521 = vmatprep.subr.bf16.mxu0 0
    %522 = vmatpush2.bf16.msra.mxu0 0
    %523 = vmatprep.subr.bf16.mxu0 0
    %524 = vmatpush2.bf16.msra.mxu0 0
    %525 = vmatprep.subr.bf16.mxu0 0
    %526 = vmatpush2.bf16.msra.mxu0 0
    %527 = vmatprep.subr.bf16.mxu0 0
    %528 = vmatpush2.bf16.msra.mxu0 0
    %529 = vmatprep.subr.bf16.mxu0 0
    %530 = vmatpush2.bf16.msra.mxu0 0
    %531 = vmatprep.mubr.bf16.mxu0 0
    %532 = vmatmul.mubr.bf16.gmra.mxu0 %v497
    %v533 = vpop.f32.mrf.mxu0
    %v534 = vadd.f32 0.0, %v533
    %v535 = vpop.f32.mrf.mxu0
    %v536 = vpop.f32.mrf.mxu0
    %v537 = vadd.f32 0.0, %v536
    %v538 = vpop.f32.mrf.mxu0
    %539 = vdwg.mxu0
    %540 = vrot.lane.b32.xlu0 %v163, 104
    %v541 = vpop.permute.xlu0 %540
    %542 = vrot.lane.b32.xlu0 %v163, 72
    %v543 = vpop.permute.xlu0 %542
    %v545 = vsel %vm167, %v541, 0
    %v548 = vsel %vm167, %v543, 0
    %550 = vmatprep.subr.bf16.mxu0 0
    %551 = vmatpush1.bf16.xpose.msra.mxu0 0
    %552 = vmatprep.subr.bf16.mxu0 0
    %553 = vmatpush1.bf16.xpose.msra.mxu0 0
    %554 = vmatprep.subr.bf16.mxu0 0
    %555 = vmatpush1.bf16.xpose.msra.mxu0 0
    %556 = vmatprep.subr.bf16.mxu0 0
    %557 = vmatpush1.bf16.xpose.msra.mxu0 0
    %558 = vmatprep.subr.bf16.mxu0 0
    %559 = vmatpush1.bf16.xpose.msra.mxu0 0
    %560 = vmatprep.subr.bf16.mxu0 0
    %561 = vmatpush1.bf16.xpose.msra.mxu0 0
    %562 = vmatprep.subr.bf16.mxu0 0
    %563 = vmatpush1.bf16.xpose.msra.mxu0 0
    %564 = vmatprep.subr.bf16.mxu0 0
    %565 = vmatpush1.bf16.xpose.msra.mxu0 %v548
    %566 = vmatprep.subr.bf16.mxu0 0
    %567 = vmatpush2.bf16.xpose.msra.mxu0 0
    %568 = vmatprep.subr.bf16.mxu0 0
    %569 = vmatpush2.bf16.xpose.msra.mxu0 0
    %570 = vmatprep.subr.bf16.mxu0 0
    %571 = vmatpush2.bf16.xpose.msra.mxu0 0
    %572 = vmatprep.subr.bf16.mxu0 0
    %573 = vmatpush2.bf16.xpose.msra.mxu0 0
    %574 = vmatprep.subr.bf16.mxu0 0
    %575 = vmatpush2.bf16.xpose.msra.mxu0 0
    %576 = vmatprep.subr.bf16.mxu0 0
    %577 = vmatpush2.bf16.xpose.msra.mxu0 0
    %578 = vmatprep.subr.bf16.mxu0 0
    %579 = vmatpush2.bf16.xpose.msra.mxu0 0
    %580 = vmatprep.subr.bf16.mxu0 0
    %581 = vmatpush2.bf16.xpose.msra.mxu0 0
    %582 = vmatprep.mubr.bf16.mxu0 0
    %583 = vmatmul.mubr.bf16.gmra.mxu0 %v545
    %v584 = vpop.f32.mrf.mxu0
    %v585 = vadd.f32 0.0, %v584
    %v586 = vpop.f32.mrf.mxu0
    %v587 = vpop.f32.mrf.mxu0
    %v588 = vadd.f32 0.0, %v587
    %v589 = vpop.f32.mrf.mxu0
    %590 = vdwg.mxu0
    %v591 = vmul.f32 %v585, 0.35355338
    %v592 = vmul.f32 %v588, 0.35355338
    %v593 = vadd.f32 %v591, %v54
    %v594 = vadd.f32 %v592, %v55
    %v595 = vsel %vm219, %v593, -inf
    %596 = vmax.xlane.f32.xlu0 %v595
    %v597 = vpop.xlane.xlu0 %596
    %v598 = vsel %vm219, %v594, -inf
    %599 = vmax.xlane.f32.xlu0 %v598
    %v600 = vpop.xlane.xlu0 %599
    %v601 = vsub.f32 %v593, %v597
    %v602 = vsub.f32 %v594, %v600
    %v603 = vmul.f32 %v601, 1.442695
    %v604 = vpow.pop %v603
    %v605 = vmul.f32 %v602, 1.442695
    %v606 = vpow.pop %v605
    %v607 = vsel %vm219, %v604, 0.0
    %608 = vadd.xlane.f32.xlu0 %v607
    %v609 = vpop.xlane.xlu0 %608
    %v610 = vsel %vm219, %v606, 0.0
    %611 = vadd.xlane.f32.xlu0 %v610
    %v612 = vpop.xlane.xlu0 %611
    %v613 = vrcp.pop %v609
    %v614 = vrcp.pop %v612
    %v615 = vmul.f32 %v604, %v613
    %v616 = vmul.f32 %v606, %v614
    %v617 = vpack.c.bf16 %v616, %v615
    %618 = vrot.lane.b32.xlu0 %v163, 40
    %v619 = vpop.permute.xlu0 %618
    %v622 = vsel %vm219, %v617, 0
    %624 = vmatprep.subr.bf16.mxu0 0
    %625 = vmatpush1.bf16.msra.mxu0 0
    %626 = vmatprep.subr.bf16.mxu0 0
    %627 = vmatpush1.bf16.msra.mxu0 0
    %628 = vmatprep.subr.bf16.mxu0 0
    %629 = vmatpush1.bf16.msra.mxu0 0
    %630 = vmatprep.subr.bf16.mxu0 0
    %631 = vmatpush1.bf16.msra.mxu0 0
    %632 = vmatprep.subr.bf16.mxu0 0
    %633 = vmatpush1.bf16.msra.mxu0 0
    %634 = vmatprep.subr.bf16.mxu0 0
    %635 = vmatpush1.bf16.msra.mxu0 0
    %636 = vmatprep.subr.bf16.mxu0 0
    %637 = vmatpush1.bf16.msra.mxu0 0
    %638 = vmatprep.subr.bf16.mxu0 0
    %639 = vmatpush1.bf16.msra.mxu0 %v619
    %640 = vmatprep.subr.bf16.mxu0 0
    %641 = vmatpush2.bf16.msra.mxu0 0
    %642 = vmatprep.subr.bf16.mxu0 0
    %643 = vmatpush2.bf16.msra.mxu0 0
    %644 = vmatprep.subr.bf16.mxu0 0
    %645 = vmatpush2.bf16.msra.mxu0 0
    %646 = vmatprep.subr.bf16.mxu0 0
    %647 = vmatpush2.bf16.msra.mxu0 0
    %648 = vmatprep.subr.bf16.mxu0 0
    %649 = vmatpush2.bf16.msra.mxu0 0
    %650 = vmatprep.subr.bf16.mxu0 0
    %651 = vmatpush2.bf16.msra.mxu0 0
    %652 = vmatprep.subr.bf16.mxu0 0
    %653 = vmatpush2.bf16.msra.mxu0 0
    %654 = vmatprep.subr.bf16.mxu0 0
    %655 = vmatpush2.bf16.msra.mxu0 0
    %656 = vmatprep.mubr.bf16.mxu0 0
    %657 = vmatmul.mubr.bf16.gmra.mxu0 %v622
    %v658 = vpop.f32.mrf.mxu0
    %v659 = vadd.f32 0.0, %v658
    %v660 = vpop.f32.mrf.mxu0
    %v661 = vpop.f32.mrf.mxu0
    %v662 = vadd.f32 0.0, %v661
    %v663 = vpop.f32.mrf.mxu0
    %664 = vdwg.mxu0
    %667 = vrot.lane.b32.xlu0 %v409, 8
    %v668 = vpop.permute.xlu0 %667
    %669 = vrot.lane.b32.xlu0 %v412, 8
    %v670 = vpop.permute.xlu0 %669
    %675 = vrot.lane.b32.xlu0 %v534, 16
    %v676 = vpop.permute.xlu0 %675
    %677 = vrot.lane.b32.xlu0 %v537, 16
    %v678 = vpop.permute.xlu0 %677
    %683 = vrot.lane.b32.xlu0 %v659, 24
    %v684 = vpop.permute.xlu0 %683
    %685 = vrot.lane.b32.xlu0 %v662, 24
    %v686 = vpop.permute.xlu0 %685
    %v689 = vsel %vm167, %v284, %v668
    %v690 = vsel %vm167, %v287, %v670
    %v691 = vsel %vm219, %v689, %v676
    %v692 = vsel %vm219, %v690, %v678
    %vm693 = vcmask 195584
    %v694 = vsel %vm693, %v691, %v684
    %v695 = vsel %vm693, %v692, %v686
    %v696 = vpack.c.bf16 %v695, %v694
    %v697 = vld [vmem:[%s5] sm:$0xf]
    %v698 = vld [vmem:[%s5 + $0x4] sm:$0xf]
    %v699 = vld [vmem:[%s5 + $0x8] sm:$0xf]
    %v700 = vld [vmem:[%s5 + $0xc] sm:$0xf]
    %v701 = vld [vmem:[%s6] sm:$0x1]
    %v703 = vlaneseq
    %v704 = vshrl.u32 %v703, 7
    %v705 = vsub.s32 0, %v704
    %v706 = vrot.slane %v701, %v705
    %v712 = vunpack.c.l.b16 %v697
    %v713 = vunpack.c.l.b16 %v698
    %v714 = vunpack.c.l.b16 %v699
    %v715 = vunpack.c.l.b16 %v700
    %v716 = vpack.c.b16 %v713, %v712
    %v717 = vpack.c.b16 %v715, %v714
    %v721 = vsel %vm58, %v696, 0
    %723 = vmatprep.subr.bf16.mxu0 0
    %724 = vmatpush1.bf16.msra.mxu0 0
    %725 = vmatprep.subr.bf16.mxu0 0
    %726 = vmatpush1.bf16.msra.mxu0 0
    %727 = vmatprep.subr.bf16.mxu0 0
    %728 = vmatpush1.bf16.msra.mxu0 0
    %729 = vmatprep.subr.bf16.mxu0 0
    %730 = vmatpush1.bf16.msra.mxu0 0
    %731 = vmatprep.subr.bf16.mxu0 0
    %732 = vmatpush1.bf16.msra.mxu0 0
    %733 = vmatprep.subr.bf16.mxu0 0
    %734 = vmatpush1.bf16.msra.mxu0 0
    %735 = vmatprep.subr.bf16.mxu0 0
    %736 = vmatpush1.bf16.msra.mxu0 %v717
    %737 = vmatprep.subr.bf16.mxu0 0
    %738 = vmatpush1.bf16.msra.mxu0 %v716
    %739 = vmatprep.subr.bf16.mxu0 0
    %740 = vmatpush2.bf16.msra.mxu0 0
    %741 = vmatprep.subr.bf16.mxu0 0
    %742 = vmatpush2.bf16.msra.mxu0 0
    %743 = vmatprep.subr.bf16.mxu0 0
    %744 = vmatpush2.bf16.msra.mxu0 0
    %745 = vmatprep.subr.bf16.mxu0 0
    %746 = vmatpush2.bf16.msra.mxu0 0
    %747 = vmatprep.subr.bf16.mxu0 0
    %748 = vmatpush2.bf16.msra.mxu0 0
    %749 = vmatprep.subr.bf16.mxu0 0
    %750 = vmatpush2.bf16.msra.mxu0 0
    %751 = vmatprep.subr.bf16.mxu0 0
    %752 = vmatpush2.bf16.msra.mxu0 0
    %753 = vmatprep.subr.bf16.mxu0 0
    %754 = vmatpush2.bf16.msra.mxu0 0
    %755 = vmatprep.mubr.bf16.mxu0 0
    %756 = vmatmul.mubr.bf16.gmra.mxu0 %v721
    %v757 = vpop.f32.mrf.mxu0
    %v758 = vadd.f32 %v706, %v757
    %v759 = vpop.f32.mrf.mxu0
    %v760 = vpop.f32.mrf.mxu0
    %v761 = vadd.f32 %v706, %v760
    %v762 = vpop.f32.mrf.mxu0
    %763 = vdwg.mxu0
    %v764 = vadd.f32 %v758, %v52
    %v765 = vadd.f32 %v761, %v53
    %v766 = vld [vmem:[%s7] sm:$0x1]
    %v767 = vld [vmem:[%s8] sm:$0x1]
    %v768 = vsel %vm58, %v764, 0.0
    %769 = vadd.xlane.f32.xlu0 %v768
    %v770 = vpop.xlane.xlu0 %769
    %v771 = vsel %vm58, %v765, 0.0
    %772 = vadd.xlane.f32.xlu0 %v771
    %v773 = vpop.xlane.xlu0 %772
    %v774 = vmul.f32 %v770, %v65
    %v775 = vmul.f32 %v773, %v65
    %v776 = vsub.f32 %v764, %v774
    %v777 = vsub.f32 %v765, %v775
    %v778 = vmul.f32 %v776, %v776
    %v779 = vmul.f32 %v777, %v777
    %v780 = vsel %vm58, %v778, 0.0
    %781 = vadd.xlane.f32.xlu0 %v780
    %v782 = vpop.xlane.xlu0 %781
    %v783 = vsel %vm58, %v779, 0.0
    %784 = vadd.xlane.f32.xlu0 %v783
    %v785 = vpop.xlane.xlu0 %784
    %v786 = vmul.f32 %v782, %v65
    %v787 = vmul.f32 %v785, %v65
    %v788 = vadd.f32 %v786, 1e-05
    %v789 = vadd.f32 %v787, 1e-05
    %v790 = vrsqrt.pop %v788
    %v791 = vrsqrt.pop %v789
    %v792 = vmul.f32 %v776, %v790
    %v793 = vmul.f32 %v777, %v791
    %v795 = vlaneseq
    %v796 = vshrl.u32 %v795, 7
    %v797 = vsub.s32 0, %v796
    %v798 = vrot.slane %v766, %v797
    %v800 = vmul.f32 %v792, %v798
    %v801 = vmul.f32 %v793, %v798
    %v803 = vlaneseq
    %v804 = vshrl.u32 %v803, 7
    %v805 = vsub.s32 0, %v804
    %v806 = vrot.slane %v767, %v805
    %v808 = vadd.f32 %v800, %v806
    %v809 = vadd.f32 %v801, %v806
    %v810 = vpack.c.bf16 %v809, %v808
    %v811 = vld [vmem:[%s9] sm:$0xf]
    %v812 = vld [vmem:[%s9 + $0x4] sm:$0xf]
    %v813 = vld [vmem:[%s9 + $0x8] sm:$0xf]
    %v814 = vld [vmem:[%s9 + $0xc] sm:$0xf]
    %v815 = vld [vmem:[%s10] sm:$0x1]
    %v817 = vlaneseq
    %v818 = vshrl.u32 %v817, 7
    %v819 = vsub.s32 0, %v818
    %v820 = vrot.slane %v815, %v819
    %v826 = vunpack.c.l.b16 %v811
    %v827 = vunpack.c.l.b16 %v812
    %v828 = vunpack.c.l.b16 %v813
    %v829 = vunpack.c.l.b16 %v814
    %v830 = vpack.c.b16 %v827, %v826
    %v831 = vpack.c.b16 %v829, %v828
    %v835 = vsel %vm58, %v810, 0
    %837 = vmatprep.subr.bf16.mxu0 0
    %838 = vmatpush1.bf16.msra.mxu0 0
    %839 = vmatprep.subr.bf16.mxu0 0
    %840 = vmatpush1.bf16.msra.mxu0 0
    %841 = vmatprep.subr.bf16.mxu0 0
    %842 = vmatpush1.bf16.msra.mxu0 0
    %843 = vmatprep.subr.bf16.mxu0 0
    %844 = vmatpush1.bf16.msra.mxu0 0
    %845 = vmatprep.subr.bf16.mxu0 0
    %846 = vmatpush1.bf16.msra.mxu0 0
    %847 = vmatprep.subr.bf16.mxu0 0
    %848 = vmatpush1.bf16.msra.mxu0 0
    %849 = vmatprep.subr.bf16.mxu0 0
    %850 = vmatpush1.bf16.msra.mxu0 %v831
    %851 = vmatprep.subr.bf16.mxu0 0
    %852 = vmatpush1.bf16.msra.mxu0 %v830
    %853 = vmatprep.subr.bf16.mxu0 0
    %854 = vmatpush2.bf16.msra.mxu0 0
    %855 = vmatprep.subr.bf16.mxu0 0
    %856 = vmatpush2.bf16.msra.mxu0 0
    %857 = vmatprep.subr.bf16.mxu0 0
    %858 = vmatpush2.bf16.msra.mxu0 0
    %859 = vmatprep.subr.bf16.mxu0 0
    %860 = vmatpush2.bf16.msra.mxu0 0
    %861 = vmatprep.subr.bf16.mxu0 0
    %862 = vmatpush2.bf16.msra.mxu0 0
    %863 = vmatprep.subr.bf16.mxu0 0
    %864 = vmatpush2.bf16.msra.mxu0 0
    %865 = vmatprep.subr.bf16.mxu0 0
    %866 = vmatpush2.bf16.msra.mxu0 0
    %867 = vmatprep.subr.bf16.mxu0 0
    %868 = vmatpush2.bf16.msra.mxu0 0
    %869 = vmatprep.mubr.bf16.mxu0 0
    %870 = vmatmul.mubr.bf16.gmra.mxu0 %v835
    %v871 = vpop.f32.mrf.mxu0
    %v872 = vadd.f32 %v820, %v871
    %v873 = vpop.f32.mrf.mxu0
    %v874 = vpop.f32.mrf.mxu0
    %v875 = vadd.f32 %v820, %v874
    %v876 = vpop.f32.mrf.mxu0
    %877 = vdwg.mxu0
    %v878 = vmul.f32 %v872, 0.5
    %v879 = vmul.f32 %v875, 0.5
    %v880 = vmul.f32 %v872, 0.70710677
    %v881 = vmul.f32 %v875, 0.70710677
    %v882 = verf.f32.pop %v880
    %v883 = verf.f32.pop %v881
    %v884 = vadd.f32 %v882, 1.0
    %v885 = vadd.f32 %v883, 1.0
    %v886 = vmul.f32 %v878, %v884
    %v887 = vmul.f32 %v879, %v885
    %v888 = vpack.c.bf16 %v887, %v886
    %v889 = vld [vmem:[%s11] sm:$0xf]
    %v890 = vld [vmem:[%s11 + $0x4] sm:$0xf]
    %v891 = vld [vmem:[%s11 + $0x8] sm:$0xf]
    %v892 = vld [vmem:[%s11 + $0xc] sm:$0xf]
    %v893 = vld [vmem:[%s11 + $0x10] sm:$0xf]
    %v894 = vld [vmem:[%s11 + $0x14] sm:$0xf]
    %v895 = vld [vmem:[%s11 + $0x18] sm:$0xf]
    %v896 = vld [vmem:[%s11 + $0x1c] sm:$0xf]
    %v897 = vld [vmem:[%s12] sm:$0x1]
    %v899 = vlaneseq
    %v900 = vshrl.u32 %v899, 7
    %v901 = vsub.s32 0, %v900
    %v902 = vrot.slane %v897, %v901
    %v912 = vunpack.c.l.b16 %v889
    %v913 = vunpack.c.l.b16 %v890
    %v914 = vunpack.c.l.b16 %v891
    %v915 = vunpack.c.l.b16 %v892
    %v916 = vunpack.c.l.b16 %v893
    %v917 = vunpack.c.l.b16 %v894
    %v918 = vunpack.c.l.b16 %v895
    %v919 = vunpack.c.l.b16 %v896
    %v920 = vpack.c.b16 %v913, %v912
    %v921 = vpack.c.b16 %v915, %v914
    %v922 = vpack.c.b16 %v917, %v916
    %v923 = vpack.c.b16 %v919, %v918
    %vm928 = vcmask 523264
    %v930 = vsel %vm928, %v888, 0
    %932 = vmatprep.subr.bf16.mxu0 0
    %933 = vmatpush1.bf16.msra.mxu0 0
    %934 = vmatprep.subr.bf16.mxu0 0
    %935 = vmatpush1.bf16.msra.mxu0 0
    %936 = vmatprep.subr.bf16.mxu0 0
    %937 = vmatpush1.bf16.msra.mxu0 0
    %938 = vmatprep.subr.bf16.mxu0 0
    %939 = vmatpush1.bf16.msra.mxu0 0
    %940 = vmatprep.subr.bf16.mxu0 0
    %941 = vmatpush1.bf16.msra.mxu0 %v923
    %942 = vmatprep.subr.bf16.mxu0 0
    %943 = vmatpush1.bf16.msra.mxu0 %v922
    %944 = vmatprep.subr.bf16.mxu0 0
    %945 = vmatpush1.bf16.msra.mxu0 %v921
    %946 = vmatprep.subr.bf16.mxu0 0
    %947 = vmatpush1.bf16.msra.mxu0 %v920
    %948 = vmatprep.subr.bf16.mxu0 0
    %949 = vmatpush2.bf16.msra.mxu0 0
    %950 = vmatprep.subr.bf16.mxu0 0
    %951 = vmatpush2.bf16.msra.mxu0 0
    %952 = vmatprep.subr.bf16.mxu0 0
    %953 = vmatpush2.bf16.msra.mxu0 0
    %954 = vmatprep.subr.bf16.mxu0 0
    %955 = vmatpush2.bf16.msra.mxu0 0
    %956 = vmatprep.subr.bf16.mxu0 0
    %957 = vmatpush2.bf16.msra.mxu0 0
    %958 = vmatprep.subr.bf16.mxu0 0
    %959 = vmatpush2.bf16.msra.mxu0 0
    %960 = vmatprep.subr.bf16.mxu0 0
    %961 = vmatpush2.bf16.msra.mxu0 0
    %962 = vmatprep.subr.bf16.mxu0 0
    %963 = vmatpush2.bf16.msra.mxu0 0
    %964 = vmatprep.mubr.bf16.mxu0 0
    %965 = vmatmul.mubr.bf16.gmra.mxu0 %v930
    %v966 = vpop.f32.mrf.mxu0
    %v967 = vadd.f32 %v902, %v966
    %v968 = vpop.f32.mrf.mxu0
    %v969 = vpop.f32.mrf.mxu0
    %v970 = vadd.f32 %v902, %v969
    %v971 = vpop.f32.mrf.mxu0
    %972 = vdwg.mxu0
    %v973 = vadd.f32 %v967, %v764
    %v974 = vadd.f32 %v970, %v765
    %s975 = scalar_lea.vmem %s2, 1
    %v976 = vld [vmem:[%s975] sm:$0x1]
    %s977 = scalar_lea.vmem %s3, 1
    %v978 = vld [vmem:[%s977] sm:$0x1]
    %v979 = vsel %vm58, %v973, 0.0
    %980 = vadd.xlane.f32.xlu0 %v979
    %v981 = vpop.xlane.xlu0 %980
    %v982 = vsel %vm58, %v974, 0.0
    %983 = vadd.xlane.f32.xlu0 %v982
    %v984 = vpop.xlane.xlu0 %983
    %v985 = vmul.f32 %v981, %v65
    %v986 = vmul.f32 %v984, %v65
    %v987 = vsub.f32 %v973, %v985
    %v988 = vsub.f32 %v974, %v986
    %v989 = vmul.f32 %v987, %v987
    %v990 = vmul.f32 %v988, %v988
    %v991 = vsel %vm58, %v989, 0.0
    %992 = vadd.xlane.f32.xlu0 %v991
    %v993 = vpop.xlane.xlu0 %992
    %v994 = vsel %vm58, %v990, 0.0
    %995 = vadd.xlane.f32.xlu0 %v994
    %v996 = vpop.xlane.xlu0 %995
    %v997 = vmul.f32 %v993, %v65
    %v998 = vmul.f32 %v996, %v65
    %v999 = vadd.f32 %v997, 1e-05
    %v1000 = vadd.f32 %v998, 1e-05
    %v1001 = vrsqrt.pop %v999
    %v1002 = vrsqrt.pop %v1000
    %v1003 = vmul.f32 %v987, %v1001
    %v1004 = vmul.f32 %v988, %v1002
    %v1006 = vlaneseq
    %v1007 = vshrl.u32 %v1006, 7
    %v1008 = vsub.s32 0, %v1007
    %v1009 = vrot.slane %v976, %v1008
    %v1011 = vmul.f32 %v1003, %v1009
    %v1012 = vmul.f32 %v1004, %v1009
    %v1014 = vlaneseq
    %v1015 = vshrl.u32 %v1014, 7
    %v1016 = vsub.s32 0, %v1015
    %v1017 = vrot.slane %v978, %v1016
    %v1019 = vadd.f32 %v1011, %v1017
    %v1020 = vadd.f32 %v1012, %v1017
    %v1021 = vpack.c.bf16 %v1020, %v1019
    %s1022 = scalar_lea.vmem %s4, 16
    %v1023 = vld [vmem:[%s1022] sm:$0xf]
    %v1024 = vld [vmem:[%s1022 + $0x4] sm:$0xf]
    %v1025 = vld [vmem:[%s1022 + $0x8] sm:$0xf]
    %v1026 = vld [vmem:[%s1022 + $0xc] sm:$0xf]
    %v1031 = vunpack.c.l.b16 %v1023
    %v1032 = vunpack.c.l.b16 %v1024
    %v1033 = vunpack.c.l.b16 %v1025
    %v1034 = vunpack.c.l.b16 %v1026
    %v1035 = vpack.c.b16 %v1032, %v1031
    %v1036 = vpack.c.b16 %v1034, %v1033
    %v1040 = vsel %vm58, %v1021, 0
    %1042 = vmatprep.subr.bf16.mxu0 0
    %1043 = vmatpush1.bf16.msra.mxu0 0
    %1044 = vmatprep.subr.bf16.mxu0 0
    %1045 = vmatpush1.bf16.msra.mxu0 0
    %1046 = vmatprep.subr.bf16.mxu0 0
    %1047 = vmatpush1.bf16.msra.mxu0 0
    %1048 = vmatprep.subr.bf16.mxu0 0
    %1049 = vmatpush1.bf16.msra.mxu0 0
    %1050 = vmatprep.subr.bf16.mxu0 0
    %1051 = vmatpush1.bf16.msra.mxu0 0
    %1052 = vmatprep.subr.bf16.mxu0 0
    %1053 = vmatpush1.bf16.msra.mxu0 0
    %1054 = vmatprep.subr.bf16.mxu0 0
    %1055 = vmatpush1.bf16.msra.mxu0 %v1036
    %1056 = vmatprep.subr.bf16.mxu0 0
    %1057 = vmatpush1.bf16.msra.mxu0 %v1035
    %1058 = vmatprep.subr.bf16.mxu0 0
    %1059 = vmatpush2.bf16.msra.mxu0 0
    %1060 = vmatprep.subr.bf16.mxu0 0
    %1061 = vmatpush2.bf16.msra.mxu0 0
    %1062 = vmatprep.subr.bf16.mxu0 0
    %1063 = vmatpush2.bf16.msra.mxu0 0
    %1064 = vmatprep.subr.bf16.mxu0 0
    %1065 = vmatpush2.bf16.msra.mxu0 0
    %1066 = vmatprep.subr.bf16.mxu0 0
    %1067 = vmatpush2.bf16.msra.mxu0 0
    %1068 = vmatprep.subr.bf16.mxu0 0
    %1069 = vmatpush2.bf16.msra.mxu0 0
    %1070 = vmatprep.subr.bf16.mxu0 0
    %1071 = vmatpush2.bf16.msra.mxu0 0
    %1072 = vmatprep.subr.bf16.mxu0 0
    %1073 = vmatpush2.bf16.msra.mxu0 0
    %1074 = vmatprep.mubr.bf16.mxu0 0
    %1075 = vmatmul.mubr.bf16.gmra.mxu0 %v1040
    %v1076 = vpop.f32.mrf.mxu0
    %v1077 = vadd.f32 0.0, %v1076
    %v1078 = vpop.f32.mrf.mxu0
    %v1079 = vpop.f32.mrf.mxu0
    %v1080 = vadd.f32 0.0, %v1079
    %v1081 = vpop.f32.mrf.mxu0
    %1082 = vdwg.mxu0
    %v1083 = vpack.c.bf16 %v1080, %v1077
    %1085 = vrot.lane.b32.xlu0 %v1083, 96
    %v1086 = vpop.permute.xlu0 %1085
    %v1088 = vsel %vm167, %v1083, 0
    %v1091 = vsel %vm167, %v1086, 0
    %1093 = vmatprep.subr.bf16.mxu0 0
    %1094 = vmatpush1.bf16.xpose.msra.mxu0 0
    %1095 = vmatprep.subr.bf16.mxu0 0
    %1096 = vmatpush1.bf16.xpose.msra.mxu0 0
    %1097 = vmatprep.subr.bf16.mxu0 0
    %1098 = vmatpush1.bf16.xpose.msra.mxu0 0
    %1099 = vmatprep.subr.bf16.mxu0 0
    %1100 = vmatpush1.bf16.xpose.msra.mxu0 0
    %1101 = vmatprep.subr.bf16.mxu0 0
    %1102 = vmatpush1.bf16.xpose.msra.mxu0 0
    %1103 = vmatprep.subr.bf16.mxu0 0
    %1104 = vmatpush1.bf16.xpose.msra.mxu0 0
    %1105 = vmatprep.subr.bf16.mxu0 0
    %1106 = vmatpush1.bf16.xpose.msra.mxu0 0
    %1107 = vmatprep.subr.bf16.mxu0 0
    %1108 = vmatpush1.bf16.xpose.msra.mxu0 %v1091
    %1109 = vmatprep.subr.bf16.mxu0 0
    %1110 = vmatpush2.bf16.xpose.msra.mxu0 0
    %1111 = vmatprep.subr.bf16.mxu0 0
    %1112 = vmatpush2.bf16.xpose.msra.mxu0 0
    %1113 = vmatprep.subr.bf16.mxu0 0
    %1114 = vmatpush2.bf16.xpose.msra.mxu0 0
    %1115 = vmatprep.subr.bf16.mxu0 0
    %1116 = vmatpush2.bf16.xpose.msra.mxu0 0
    %1117 = vmatprep.subr.bf16.mxu0 0
    %1118 = vmatpush2.bf16.xpose.msra.mxu0 0
    %1119 = vmatprep.subr.bf16.mxu0 0
    %1120 = vmatpush2.bf16.xpose.msra.mxu0 0
    %1121 = vmatprep.subr.bf16.mxu0 0
    %1122 = vmatpush2.bf16.xpose.msra.mxu0 0
    %1123 = vmatprep.subr.bf16.mxu0 0
    %1124 = vmatpush2.bf16.xpose.msra.mxu0 0
    %1125 = vmatprep.mubr.bf16.mxu0 0
    %1126 = vmatmul.mubr.bf16.gmra.mxu0 %v1088
    %v1127 = vpop.f32.mrf.mxu0
    %v1128 = vadd.f32 0.0, %v1127
    %v1129 = vpop.f32.mrf.mxu0
    %v1130 = vpop.f32.mrf.mxu0
    %v1131 = vadd.f32 0.0, %v1130
    %v1132 = vpop.f32.mrf.mxu0
    %1133 = vdwg.mxu0
    %v1134 = vmul.f32 %v1128, 0.35355338
    %v1135 = vmul.f32 %v1131, 0.35355338
    %v1136 = vadd.f32 %v1134, %v54
    %v1137 = vadd.f32 %v1135, %v55
    %v1138 = vsel %vm219, %v1136, -inf
    %1139 = vmax.xlane.f32.xlu0 %v1138
    %v1140 = vpop.xlane.xlu0 %1139
    %v1141 = vsel %vm219, %v1137, -inf
    %1142 = vmax.xlane.f32.xlu0 %v1141
    %v1143 = vpop.xlane.xlu0 %1142
    %v1144 = vsub.f32 %v1136, %v1140
    %v1145 = vsub.f32 %v1137, %v1143
    %v1146 = vmul.f32 %v1144, 1.442695
    %v1147 = vpow.pop %v1146
    %v1148 = vmul.f32 %v1145, 1.442695
    %v1149 = vpow.pop %v1148
    %v1150 = vsel %vm219, %v1147, 0.0
    %1151 = vadd.xlane.f32.xlu0 %v1150
    %v1152 = vpop.xlane.xlu0 %1151
    %v1153 = vsel %vm219, %v1149, 0.0
    %1154 = vadd.xlane.f32.xlu0 %v1153
    %v1155 = vpop.xlane.xlu0 %1154
    %v1156 = vrcp.pop %v1152
    %v1157 = vrcp.pop %v1155
    %v1158 = vmul.f32 %v1147, %v1156
    %v1159 = vmul.f32 %v1149, %v1157
    %v1160 = vpack.c.bf16 %v1159, %v1158
    %1161 = vrot.lane.b32.xlu0 %v1083, 64
    %v1162 = vpop.permute.xlu0 %1161
    %v1165 = vsel %vm219, %v1160, 0
    %1167 = vmatprep.subr.bf16.mxu0 0
    %1168 = vmatpush1.bf16.msra.mxu0 0
    %1169 = vmatprep.subr.bf16.mxu0 0
    %1170 = vmatpush1.bf16.msra.mxu0 0
    %1171 = vmatprep.subr.bf16.mxu0 0
    %1172 = vmatpush1.bf16.msra.mxu0 0
    %1173 = vmatprep.subr.bf16.mxu0 0
    %1174 = vmatpush1.bf16.msra.mxu0 0
    %1175 = vmatprep.subr.bf16.mxu0 0
    %1176 = vmatpush1.bf16.msra.mxu0 0
    %1177 = vmatprep.subr.bf16.mxu0 0
    %1178 = vmatpush1.bf16.msra.mxu0 0
    %1179 = vmatprep.subr.bf16.mxu0 0
    %1180 = vmatpush1.bf16.msra.mxu0 0
    %1181 = vmatprep.subr.bf16.mxu0 0
    %1182 = vmatpush1.bf16.msra.mxu0 %v1162
    %1183 = vmatprep.subr.bf16.mxu0 0
    %1184 = vmatpush2.bf16.msra.mxu0 0
    %1185 = vmatprep.subr.bf16.mxu0 0
    %1186 = vmatpush2.bf16.msra.mxu0 0
    %1187 = vmatprep.subr.bf16.mxu0 0
    %1188 = vmatpush2.bf16.msra.mxu0 0
    %1189 = vmatprep.subr.bf16.mxu0 0
    %1190 = vmatpush2.bf16.msra.mxu0 0
    %1191 = vmatprep.subr.bf16.mxu0 0
    %1192 = vmatpush2.bf16.msra.mxu0 0
    %1193 = vmatprep.subr.bf16.mxu0 0
    %1194 = vmatpush2.bf16.msra.mxu0 0
    %1195 = vmatprep.subr.bf16.mxu0 0
    %1196 = vmatpush2.bf16.msra.mxu0 0
    %1197 = vmatprep.subr.bf16.mxu0 0
    %1198 = vmatpush2.bf16.msra.mxu0 0
    %1199 = vmatprep.mubr.bf16.mxu0 0
    %1200 = vmatmul.mubr.bf16.gmra.mxu0 %v1165
    %v1201 = vpop.f32.mrf.mxu0
    %v1202 = vadd.f32 0.0, %v1201
    %v1203 = vpop.f32.mrf.mxu0
    %v1204 = vpop.f32.mrf.mxu0
    %v1205 = vadd.f32 0.0, %v1204
    %v1206 = vpop.f32.mrf.mxu0
    %1207 = vdwg.mxu0
    %1208 = vrot.lane.b32.xlu0 %v1083, 120
    %v1209 = vpop.permute.xlu0 %1208
    %1210 = vrot.lane.b32.xlu0 %v1083, 88
    %v1211 = vpop.permute.xlu0 %1210
    %v1213 = vsel %vm167, %v1209, 0
    %v1216 = vsel %vm167, %v1211, 0
    %1218 = vmatprep.subr.bf16.mxu0 0
    %1219 = vmatpush1.bf16.xpose.msra.mxu0 0
    %1220 = vmatprep.subr.bf16.mxu0 0
    %1221 = vmatpush1.bf16.xpose.msra.mxu0 0
    %1222 = vmatprep.subr.bf16.mxu0 0
    %1223 = vmatpush1.bf16.xpose.msra.mxu0 0
    %1224 = vmatprep.subr.bf16.mxu0 0
    %1225 = vmatpush1.bf16.xpose.msra.mxu0 0
    %1226 = vmatprep.subr.bf16.mxu0 0
    %1227 = vmatpush1.bf16.xpose.msra.mxu0 0
    %1228 = vmatprep.subr.bf16.mxu0 0
    %1229 = vmatpush1.bf16.xpose.msra.mxu0 0
    %1230 = vmatprep.subr.bf16.mxu0 0
    %1231 = vmatpush1.bf16.xpose.msra.mxu0 0
    %1232 = vmatprep.subr.bf16.mxu0 0
    %1233 = vmatpush1.bf16.xpose.msra.mxu0 %v1216
    %1234 = vmatprep.subr.bf16.mxu0 0
    %1235 = vmatpush2.bf16.xpose.msra.mxu0 0
    %1236 = vmatprep.subr.bf16.mxu0 0
    %1237 = vmatpush2.bf16.xpose.msra.mxu0 0
    %1238 = vmatprep.subr.bf16.mxu0 0
    %1239 = vmatpush2.bf16.xpose.msra.mxu0 0
    %1240 = vmatprep.subr.bf16.mxu0 0
    %1241 = vmatpush2.bf16.xpose.msra.mxu0 0
    %1242 = vmatprep.subr.bf16.mxu0 0
    %1243 = vmatpush2.bf16.xpose.msra.mxu0 0
    %1244 = vmatprep.subr.bf16.mxu0 0
    %1245 = vmatpush2.bf16.xpose.msra.mxu0 0
    %1246 = vmatprep.subr.bf16.mxu0 0
    %1247 = vmatpush2.bf16.xpose.msra.mxu0 0
    %1248 = vmatprep.subr.bf16.mxu0 0
    %1249 = vmatpush2.bf16.xpose.msra.mxu0 0
    %1250 = vmatprep.mubr.bf16.mxu0 0
    %1251 = vmatmul.mubr.bf16.gmra.mxu0 %v1213
    %v1252 = vpop.f32.mrf.mxu0
    %v1253 = vadd.f32 0.0, %v1252
    %v1254 = vpop.f32.mrf.mxu0
    %v1255 = vpop.f32.mrf.mxu0
    %v1256 = vadd.f32 0.0, %v1255
    %v1257 = vpop.f32.mrf.mxu0
    %1258 = vdwg.mxu0
    %v1259 = vmul.f32 %v1253, 0.35355338
    %v1260 = vmul.f32 %v1256, 0.35355338
    %v1261 = vadd.f32 %v1259, %v54
    %v1262 = vadd.f32 %v1260, %v55
    %v1263 = vsel %vm219, %v1261, -inf
    %1264 = vmax.xlane.f32.xlu0 %v1263
    %v1265 = vpop.xlane.xlu0 %1264
    %v1266 = vsel %vm219, %v1262, -inf
    %1267 = vmax.xlane.f32.xlu0 %v1266
    %v1268 = vpop.xlane.xlu0 %1267
    %v1269 = vsub.f32 %v1261, %v1265
    %v1270 = vsub.f32 %v1262, %v1268
    %v1271 = vmul.f32 %v1269, 1.442695
    %v1272 = vpow.pop %v1271
    %v1273 = vmul.f32 %v1270, 1.442695
    %v1274 = vpow.pop %v1273
    %v1275 = vsel %vm219, %v1272, 0.0
    %1276 = vadd.xlane.f32.xlu0 %v1275
    %v1277 = vpop.xlane.xlu0 %1276
    %v1278 = vsel %vm219, %v1274, 0.0
    %1279 = vadd.xlane.f32.xlu0 %v1278
    %v1280 = vpop.xlane.xlu0 %1279
    %v1281 = vrcp.pop %v1277
    %v1282 = vrcp.pop %v1280
    %v1283 = vmul.f32 %v1272, %v1281
    %v1284 = vmul.f32 %v1274, %v1282
    %v1285 = vpack.c.bf16 %v1284, %v1283
    %1286 = vrot.lane.b32.xlu0 %v1083, 56
    %v1287 = vpop.permute.xlu0 %1286
    %v1290 = vsel %vm219, %v1285, 0
    %1292 = vmatprep.subr.bf16.mxu0 0
    %1293 = vmatpush1.bf16.msra.mxu0 0
    %1294 = vmatprep.subr.bf16.mxu0 0
    %1295 = vmatpush1.bf16.msra.mxu0 0
    %1296 = vmatprep.subr.bf16.mxu0 0
    %1297 = vmatpush1.bf16.msra.mxu0 0
    %1298 = vmatprep.subr.bf16.mxu0 0
    %1299 = vmatpush1.bf16.msra.mxu0 0
    %1300 = vmatprep.subr.bf16.mxu0 0
    %1301 = vmatpush1.bf16.msra.mxu0 0
    %1302 = vmatprep.subr.bf16.mxu0 0
    %1303 = vmatpush1.bf16.msra.mxu0 0
    %1304 = vmatprep.subr.bf16.mxu0 0
    %1305 = vmatpush1.bf16.msra.mxu0 0
    %1306 = vmatprep.subr.bf16.mxu0 0
    %1307 = vmatpush1.bf16.msra.mxu0 %v1287
    %1308 = vmatprep.subr.bf16.mxu0 0
    %1309 = vmatpush2.bf16.msra.mxu0 0
    %1310 = vmatprep.subr.bf16.mxu0 0
    %1311 = vmatpush2.bf16.msra.mxu0 0
    %1312 = vmatprep.subr.bf16.mxu0 0
    %1313 = vmatpush2.bf16.msra.mxu0 0
    %1314 = vmatprep.subr.bf16.mxu0 0
    %1315 = vmatpush2.bf16.msra.mxu0 0
    %1316 = vmatprep.subr.bf16.mxu0 0
    %1317 = vmatpush2.bf16.msra.mxu0 0
    %1318 = vmatprep.subr.bf16.mxu0 0
    %1319 = vmatpush2.bf16.msra.mxu0 0
    %1320 = vmatprep.subr.bf16.mxu0 0
    %1321 = vmatpush2.bf16.msra.mxu0 0
    %1322 = vmatprep.subr.bf16.mxu0 0
    %1323 = vmatpush2.bf16.msra.mxu0 0
    %1324 = vmatprep.mubr.bf16.mxu0 0
    %1325 = vmatmul.mubr.bf16.gmra.mxu0 %v1290
    %v1326 = vpop.f32.mrf.mxu0
    %v1327 = vadd.f32 0.0, %v1326
    %v1328 = vpop.f32.mrf.mxu0
    %v1329 = vpop.f32.mrf.mxu0
    %v1330 = vadd.f32 0.0, %v1329
    %v1331 = vpop.f32.mrf.mxu0
    %1332 = vdwg.mxu0
    %1333 = vrot.lane.b32.xlu0 %v1083, 112
    %v1334 = vpop.permute.xlu0 %1333
    %1335 = vrot.lane.b32.xlu0 %v1083, 80
    %v1336 = vpop.permute.xlu0 %1335
    %v1338 = vsel %vm167, %v1334, 0
    %v1341 = vsel %vm167, %v1336, 0
    %1343 = vmatprep.subr.bf16.mxu0 0
    %1344 = vmatpush1.bf16.xpose.msra.mxu0 0
    %1345 = vmatprep.subr.bf16.mxu0 0
    %1346 = vmatpush1.bf16.xpose.msra.mxu0 0
    %1347 = vmatprep.subr.bf16.mxu0 0
    %1348 = vmatpush1.bf16.xpose.msra.mxu0 0
    %1349 = vmatprep.subr.bf16.mxu0 0
    %1350 = vmatpush1.bf16.xpose.msra.mxu0 0
    %1351 = vmatprep.subr.bf16.mxu0 0
    %1352 = vmatpush1.bf16.xpose.msra.mxu0 0
    %1353 = vmatprep.subr.bf16.mxu0 0
    %1354 = vmatpush1.bf16.xpose.msra.mxu0 0
    %1355 = vmatprep.subr.bf16.mxu0 0
    %1356 = vmatpush1.bf16.xpose.msra.mxu0 0
    %1357 = vmatprep.subr.bf16.mxu0 0
    %1358 = vmatpush1.bf16.xpose.msra.mxu0 %v1341
    %1359 = vmatprep.subr.bf16.mxu0 0
    %1360 = vmatpush2.bf16.xpose.msra.mxu0 0
    %1361 = vmatprep.subr.bf16.mxu0 0
    %1362 = vmatpush2.bf16.xpose.msra.mxu0 0
    %1363 = vmatprep.subr.bf16.mxu0 0
    %1364 = vmatpush2.bf16.xpose.msra.mxu0 0
    %1365 = vmatprep.subr.bf16.mxu0 0
    %1366 = vmatpush2.bf16.xpose.msra.mxu0 0
    %1367 = vmatprep.subr.bf16.mxu0 0
    %1368 = vmatpush2.bf16.xpose.msra.mxu0 0
    %1369 = vmatprep.subr.bf16.mxu0 0
    %1370 = vmatpush2.bf16.xpose.msra.mxu0 0
    %1371 = vmatprep.subr.bf16.mxu0 0
    %1372 = vmatpush2.bf16.xpose.msra.mxu0 0
    %1373 = vmatprep.subr.bf16.mxu0 0
    %1374 = vmatpush2.bf16.xpose.msra.mxu0 0
    %1375 = vmatprep.mubr.bf16.mxu0 0
    %1376 = vmatmul.mubr.bf16.gmra.mxu0 %v1338
    %v1377 = vpop.f32.mrf.mxu0
    %v1378 = vadd.f32 0.0, %v1377
    %v1379 = vpop.f32.mrf.mxu0
    %v1380 = vpop.f32.mrf.mxu0
    %v1381 = vadd.f32 0.0, %v1380
    %v1382 = vpop.f32.mrf.mxu0
    %1383 = vdwg.mxu0
    %v1384 = vmul.f32 %v1378, 0.35355338
    %v1385 = vmul.f32 %v1381, 0.35355338
    %v1386 = vadd.f32 %v1384, %v54
    %v1387 = vadd.f32 %v1385, %v55
    %v1388 = vsel %vm219, %v1386, -inf
    %1389 = vmax.xlane.f32.xlu0 %v1388
    %v1390 = vpop.xlane.xlu0 %1389
    %v1391 = vsel %vm219, %v1387, -inf
    %1392 = vmax.xlane.f32.xlu0 %v1391
    %v1393 = vpop.xlane.xlu0 %1392
    %v1394 = vsub.f32 %v1386, %v1390
    %v1395 = vsub.f32 %v1387, %v1393
    %v1396 = vmul.f32 %v1394, 1.442695
    %v1397 = vpow.pop %v1396
    %v1398 = vmul.f32 %v1395, 1.442695
    %v1399 = vpow.pop %v1398
    %v1400 = vsel %vm219, %v1397, 0.0
    %1401 = vadd.xlane.f32.xlu0 %v1400
    %v1402 = vpop.xlane.xlu0 %1401
    %v1403 = vsel %vm219, %v1399, 0.0
    %1404 = vadd.xlane.f32.xlu0 %v1403
    %v1405 = vpop.xlane.xlu0 %1404
    %v1406 = vrcp.pop %v1402
    %v1407 = vrcp.pop %v1405
    %v1408 = vmul.f32 %v1397, %v1406
    %v1409 = vmul.f32 %v1399, %v1407
    %v1410 = vpack.c.bf16 %v1409, %v1408
    %1411 = vrot.lane.b32.xlu0 %v1083, 48
    %v1412 = vpop.permute.xlu0 %1411
    %v1415 = vsel %vm219, %v1410, 0
    %1417 = vmatprep.subr.bf16.mxu0 0
    %1418 = vmatpush1.bf16.msra.mxu0 0
    %1419 = vmatprep.subr.bf16.mxu0 0
    %1420 = vmatpush1.bf16.msra.mxu0 0
    %1421 = vmatprep.subr.bf16.mxu0 0
    %1422 = vmatpush1.bf16.msra.mxu0 0
    %1423 = vmatprep.subr.bf16.mxu0 0
    %1424 = vmatpush1.bf16.msra.mxu0 0
    %1425 = vmatprep.subr.bf16.mxu0 0
    %1426 = vmatpush1.bf16.msra.mxu0 0
    %1427 = vmatprep.subr.bf16.mxu0 0
    %1428 = vmatpush1.bf16.msra.mxu0 0
    %1429 = vmatprep.subr.bf16.mxu0 0
    %1430 = vmatpush1.bf16.msra.mxu0 0
    %1431 = vmatprep.subr.bf16.mxu0 0
    %1432 = vmatpush1.bf16.msra.mxu0 %v1412
    %1433 = vmatprep.subr.bf16.mxu0 0
    %1434 = vmatpush2.bf16.msra.mxu0 0
    %1435 = vmatprep.subr.bf16.mxu0 0
    %1436 = vmatpush2.bf16.msra.mxu0 0
    %1437 = vmatprep.subr.bf16.mxu0 0
    %1438 = vmatpush2.bf16.msra.mxu0 0
    %1439 = vmatprep.subr.bf16.mxu0 0
    %1440 = vmatpush2.bf16.msra.mxu0 0
    %1441 = vmatprep.subr.bf16.mxu0 0
    %1442 = vmatpush2.bf16.msra.mxu0 0
    %1443 = vmatprep.subr.bf16.mxu0 0
    %1444 = vmatpush2.bf16.msra.mxu0 0
    %1445 = vmatprep.subr.bf16.mxu0 0
    %1446 = vmatpush2.bf16.msra.mxu0 0
    %1447 = vmatprep.subr.bf16.mxu0 0
    %1448 = vmatpush2.bf16.msra.mxu0 0
    %1449 = vmatprep.mubr.bf16.mxu0 0
    %1450 = vmatmul.mubr.bf16.gmra.mxu0 %v1415
    %v1451 = vpop.f32.mrf.mxu0
    %v1452 = vadd.f32 0.0, %v1451
    %v1453 = vpop.f32.mrf.mxu0
    %v1454 = vpop.f32.mrf.mxu0
    %v1455 = vadd.f32 0.0, %v1454
    %v1456 = vpop.f32.mrf.mxu0
    %1457 = vdwg.mxu0
    %1458 = vrot.lane.b32.xlu0 %v1083, 104
    %v1459 = vpop.permute.xlu0 %1458
    %1460 = vrot.lane.b32.xlu0 %v1083, 72
    %v1461 = vpop.permute.xlu0 %1460
    %v1463 = vsel %vm167, %v1459, 0
    %v1466 = vsel %vm167, %v1461, 0
    %1468 = vmatprep.subr.bf16.mxu0 0
    %1469 = vmatpush1.bf16.xpose.msra.mxu0 0
    %1470 = vmatprep.subr.bf16.mxu0 0
    %1471 = vmatpush1.bf16.xpose.msra.mxu0 0
    %1472 = vmatprep.subr.bf16.mxu0 0
    %1473 = vmatpush1.bf16.xpose.msra.mxu0 0
    %1474 = vmatprep.subr.bf16.mxu0 0
    %1475 = vmatpush1.bf16.xpose.msra.mxu0 0
    %1476 = vmatprep.subr.bf16.mxu0 0
    %1477 = vmatpush1.bf16.xpose.msra.mxu0 0
    %1478 = vmatprep.subr.bf16.mxu0 0
    %1479 = vmatpush1.bf16.xpose.msra.mxu0 0
    %1480 = vmatprep.subr.bf16.mxu0 0
    %1481 = vmatpush1.bf16.xpose.msra.mxu0 0
    %1482 = vmatprep.subr.bf16.mxu0 0
    %1483 = vmatpush1.bf16.xpose.msra.mxu0 %v1466
    %1484 = vmatprep.subr.bf16.mxu0 0
    %1485 = vmatpush2.bf16.xpose.msra.mxu0 0
    %1486 = vmatprep.subr.bf16.mxu0 0
    %1487 = vmatpush2.bf16.xpose.msra.mxu0 0
    %1488 = vmatprep.subr.bf16.mxu0 0
    %1489 = vmatpush2.bf16.xpose.msra.mxu0 0
    %1490 = vmatprep.subr.bf16.mxu0 0
    %1491 = vmatpush2.bf16.xpose.msra.mxu0 0
    %1492 = vmatprep.subr.bf16.mxu0 0
    %1493 = vmatpush2.bf16.xpose.msra.mxu0 0
    %1494 = vmatprep.subr.bf16.mxu0 0
    %1495 = vmatpush2.bf16.xpose.msra.mxu0 0
    %1496 = vmatprep.subr.bf16.mxu0 0
    %1497 = vmatpush2.bf16.xpose.msra.mxu0 0
    %1498 = vmatprep.subr.bf16.mxu0 0
    %1499 = vmatpush2.bf16.xpose.msra.mxu0 0
    %1500 = vmatprep.mubr.bf16.mxu0 0
    %1501 = vmatmul.mubr.bf16.gmra.mxu0 %v1463
    %v1502 = vpop.f32.mrf.mxu0
    %v1503 = vadd.f32 0.0, %v1502
    %v1504 = vpop.f32.mrf.mxu0
    %v1505 = vpop.f32.mrf.mxu0
    %v1506 = vadd.f32 0.0, %v1505
    %v1507 = vpop.f32.mrf.mxu0
    %1508 = vdwg.mxu0
    %v1509 = vmul.f32 %v1503, 0.35355338
    %v1510 = vmul.f32 %v1506, 0.35355338
    %v1511 = vadd.f32 %v1509, %v54
    %v1512 = vadd.f32 %v1510, %v55
    %v1513 = vsel %vm219, %v1511, -inf
    %1514 = vmax.xlane.f32.xlu0 %v1513
    %v1515 = vpop.xlane.xlu0 %1514
    %v1516 = vsel %vm219, %v1512, -inf
    %1517 = vmax.xlane.f32.xlu0 %v1516
    %v1518 = vpop.xlane.xlu0 %1517
    %v1519 = vsub.f32 %v1511, %v1515
    %v1520 = vsub.f32 %v1512, %v1518
    %v1521 = vmul.f32 %v1519, 1.442695
    %v1522 = vpow.pop %v1521
    %v1523 = vmul.f32 %v1520, 1.442695
    %v1524 = vpow.pop %v1523
    %v1525 = vsel %vm219, %v1522, 0.0
    %1526 = vadd.xlane.f32.xlu0 %v1525
    %v1527 = vpop.xlane.xlu0 %1526
    %v1528 = vsel %vm219, %v1524, 0.0
    %1529 = vadd.xlane.f32.xlu0 %v1528
    %v1530 = vpop.xlane.xlu0 %1529
    %v1531 = vrcp.pop %v1527
    %v1532 = vrcp.pop %v1530
    %v1533 = vmul.f32 %v1522, %v1531
    %v1534 = vmul.f32 %v1524, %v1532
    %v1535 = vpack.c.bf16 %v1534, %v1533
    %1536 = vrot.lane.b32.xlu0 %v1083, 40
    %v1537 = vpop.permute.xlu0 %1536
    %v1540 = vsel %vm219, %v1535, 0
    %1542 = vmatprep.subr.bf16.mxu0 0
    %1543 = vmatpush1.bf16.msra.mxu0 0
    %1544 = vmatprep.subr.bf16.mxu0 0
    %1545 = vmatpush1.bf16.msra.mxu0 0
    %1546 = vmatprep.subr.bf16.mxu0 0
    %1547 = vmatpush1.bf16.msra.mxu0 0
    %1548 = vmatprep.subr.bf16.mxu0 0
    %1549 = vmatpush1.bf16.msra.mxu0 0
    %1550 = vmatprep.subr.bf16.mxu0 0
    %1551 = vmatpush1.bf16.msra.mxu0 0
    %1552 = vmatprep.subr.bf16.mxu0 0
    %1553 = vmatpush1.bf16.msra.mxu0 0
    %1554 = vmatprep.subr.bf16.mxu0 0
    %1555 = vmatpush1.bf16.msra.mxu0 0
    %1556 = vmatprep.subr.bf16.mxu0 0
    %1557 = vmatpush1.bf16.msra.mxu0 %v1537
    %1558 = vmatprep.subr.bf16.mxu0 0
    %1559 = vmatpush2.bf16.msra.mxu0 0
    %1560 = vmatprep.subr.bf16.mxu0 0
    %1561 = vmatpush2.bf16.msra.mxu0 0
    %1562 = vmatprep.subr.bf16.mxu0 0
    %1563 = vmatpush2.bf16.msra.mxu0 0
    %1564 = vmatprep.subr.bf16.mxu0 0
    %1565 = vmatpush2.bf16.msra.mxu0 0
    %1566 = vmatprep.subr.bf16.mxu0 0
    %1567 = vmatpush2.bf16.msra.mxu0 0
    %1568 = vmatprep.subr.bf16.mxu0 0
    %1569 = vmatpush2.bf16.msra.mxu0 0
    %1570 = vmatprep.subr.bf16.mxu0 0
    %1571 = vmatpush2.bf16.msra.mxu0 0
    %1572 = vmatprep.subr.bf16.mxu0 0
    %1573 = vmatpush2.bf16.msra.mxu0 0
    %1574 = vmatprep.mubr.bf16.mxu0 0
    %1575 = vmatmul.mubr.bf16.gmra.mxu0 %v1540
    %v1576 = vpop.f32.mrf.mxu0
    %v1577 = vadd.f32 0.0, %v1576
    %v1578 = vpop.f32.mrf.mxu0
    %v1579 = vpop.f32.mrf.mxu0
    %v1580 = vadd.f32 0.0, %v1579
    %v1581 = vpop.f32.mrf.mxu0
    %1582 = vdwg.mxu0
    %1585 = vrot.lane.b32.xlu0 %v1327, 8
    %v1586 = vpop.permute.xlu0 %1585
    %1587 = vrot.lane.b32.xlu0 %v1330, 8
    %v1588 = vpop.permute.xlu0 %1587
    %1593 = vrot.lane.b32.xlu0 %v1452, 16
    %v1594 = vpop.permute.xlu0 %1593
    %1595 = vrot.lane.b32.xlu0 %v1455, 16
    %v1596 = vpop.permute.xlu0 %1595
    %1601 = vrot.lane.b32.xlu0 %v1577, 24
    %v1602 = vpop.permute.xlu0 %1601
    %1603 = vrot.lane.b32.xlu0 %v1580, 24
    %v1604 = vpop.permute.xlu0 %1603
    %v1607 = vsel %vm167, %v1202, %v1586
    %v1608 = vsel %vm167, %v1205, %v1588
    %v1609 = vsel %vm219, %v1607, %v1594
    %v1610 = vsel %vm219, %v1608, %v1596
    %v1611 = vsel %vm693, %v1609, %v1602
    %v1612 = vsel %vm693, %v1610, %v1604
    %v1613 = vpack.c.bf16 %v1612, %v1611
    %s1614 = scalar_lea.vmem %s5, 16
    %v1615 = vld [vmem:[%s1614] sm:$0xf]
    %v1616 = vld [vmem:[%s1614 + $0x4] sm:$0xf]
    %v1617 = vld [vmem:[%s1614 + $0x8] sm:$0xf]
    %v1618 = vld [vmem:[%s1614 + $0xc] sm:$0xf]
    %s1619 = scalar_lea.vmem %s6, 1
    %v1620 = vld [vmem:[%s1619] sm:$0x1]
    %v1622 = vlaneseq
    %v1623 = vshrl.u32 %v1622, 7
    %v1624 = vsub.s32 0, %v1623
    %v1625 = vrot.slane %v1620, %v1624
    %v1631 = vunpack.c.l.b16 %v1615
    %v1632 = vunpack.c.l.b16 %v1616
    %v1633 = vunpack.c.l.b16 %v1617
    %v1634 = vunpack.c.l.b16 %v1618
    %v1635 = vpack.c.b16 %v1632, %v1631
    %v1636 = vpack.c.b16 %v1634, %v1633
    %v1640 = vsel %vm58, %v1613, 0
    %1642 = vmatprep.subr.bf16.mxu0 0
    %1643 = vmatpush1.bf16.msra.mxu0 0
    %1644 = vmatprep.subr.bf16.mxu0 0
    %1645 = vmatpush1.bf16.msra.mxu0 0
    %1646 = vmatprep.subr.bf16.mxu0 0
    %1647 = vmatpush1.bf16.msra.mxu0 0
    %1648 = vmatprep.subr.bf16.mxu0 0
    %1649 = vmatpush1.bf16.msra.mxu0 0
    %1650 = vmatprep.subr.bf16.mxu0 0
    %1651 = vmatpush1.bf16.msra.mxu0 0
    %1652 = vmatprep.subr.bf16.mxu0 0
    %1653 = vmatpush1.bf16.msra.mxu0 0
    %1654 = vmatprep.subr.bf16.mxu0 0
    %1655 = vmatpush1.bf16.msra.mxu0 %v1636
    %1656 = vmatprep.subr.bf16.mxu0 0
    %1657 = vmatpush1.bf16.msra.mxu0 %v1635
    %1658 = vmatprep.subr.bf16.mxu0 0
    %1659 = vmatpush2.bf16.msra.mxu0 0
    %1660 = vmatprep.subr.bf16.mxu0 0
    %1661 = vmatpush2.bf16.msra.mxu0 0
    %1662 = vmatprep.subr.bf16.mxu0 0
    %1663 = vmatpush2.bf16.msra.mxu0 0
    %1664 = vmatprep.subr.bf16.mxu0 0
    %1665 = vmatpush2.bf16.msra.mxu0 0
    %1666 = vmatprep.subr.bf16.mxu0 0
    %1667 = vmatpush2.bf16.msra.mxu0 0
    %1668 = vmatprep.subr.bf16.mxu0 0
    %1669 = vmatpush2.bf16.msra.mxu0 0
    %1670 = vmatprep.subr.bf16.mxu0 0
    %1671 = vmatpush2.bf16.msra.mxu0 0
    %1672 = vmatprep.subr.bf16.mxu0 0
    %1673 = vmatpush2.bf16.msra.mxu0 0
    %1674 = vmatprep.mubr.bf16.mxu0 0
    %1675 = vmatmul.mubr.bf16.gmra.mxu0 %v1640
    %v1676 = vpop.f32.mrf.mxu0
    %v1677 = vadd.f32 %v1625, %v1676
    %v1678 = vpop.f32.mrf.mxu0
    %v1679 = vpop.f32.mrf.mxu0
    %v1680 = vadd.f32 %v1625, %v1679
    %v1681 = vpop.f32.mrf.mxu0
    %1682 = vdwg.mxu0
    %v1683 = vadd.f32 %v1677, %v973
    %v1684 = vadd.f32 %v1680, %v974
    %s1685 = scalar_lea.vmem %s7, 1
    %v1686 = vld [vmem:[%s1685] sm:$0x1]
    %s1687 = scalar_lea.vmem %s8, 1
    %v1688 = vld [vmem:[%s1687] sm:$0x1]
    %v1689 = vsel %vm58, %v1683, 0.0
    %1690 = vadd.xlane.f32.xlu0 %v1689
    %v1691 = vpop.xlane.xlu0 %1690
    %v1692 = vsel %vm58, %v1684, 0.0
    %1693 = vadd.xlane.f32.xlu0 %v1692
    %v1694 = vpop.xlane.xlu0 %1693
    %v1695 = vmul.f32 %v1691, %v65
    %v1696 = vmul.f32 %v1694, %v65
    %v1697 = vsub.f32 %v1683, %v1695
    %v1698 = vsub.f32 %v1684, %v1696
    %v1699 = vmul.f32 %v1697, %v1697
    %v1700 = vmul.f32 %v1698, %v1698
    %v1701 = vsel %vm58, %v1699, 0.0
    %1702 = vadd.xlane.f32.xlu0 %v1701
    %v1703 = vpop.xlane.xlu0 %1702
    %v1704 = vsel %vm58, %v1700, 0.0
    %1705 = vadd.xlane.f32.xlu0 %v1704
    %v1706 = vpop.xlane.xlu0 %1705
    %v1707 = vmul.f32 %v1703, %v65
    %v1708 = vmul.f32 %v1706, %v65
    %v1709 = vadd.f32 %v1707, 1e-05
    %v1710 = vadd.f32 %v1708, 1e-05
    %v1711 = vrsqrt.pop %v1709
    %v1712 = vrsqrt.pop %v1710
    %v1713 = vmul.f32 %v1697, %v1711
    %v1714 = vmul.f32 %v1698, %v1712
    %v1716 = vlaneseq
    %v1717 = vshrl.u32 %v1716, 7
    %v1718 = vsub.s32 0, %v1717
    %v1719 = vrot.slane %v1686, %v1718
    %v1721 = vmul.f32 %v1713, %v1719
    %v1722 = vmul.f32 %v1714, %v1719
    %v1724 = vlaneseq
    %v1725 = vshrl.u32 %v1724, 7
    %v1726 = vsub.s32 0, %v1725
    %v1727 = vrot.slane %v1688, %v1726
    %v1729 = vadd.f32 %v1721, %v1727
    %v1730 = vadd.f32 %v1722, %v1727
    %v1731 = vpack.c.bf16 %v1730, %v1729
    %s1732 = scalar_lea.vmem %s9, 16
    %v1733 = vld [vmem:[%s1732] sm:$0xf]
    %v1734 = vld [vmem:[%s1732 + $0x4] sm:$0xf]
    %v1735 = vld [vmem:[%s1732 + $0x8] sm:$0xf]
    %v1736 = vld [vmem:[%s1732 + $0xc] sm:$0xf]
    %s1737 = scalar_lea.vmem %s10, 1
    %v1738 = vld [vmem:[%s1737] sm:$0x1]
    %v1740 = vlaneseq
    %v1741 = vshrl.u32 %v1740, 7
    %v1742 = vsub.s32 0, %v1741
    %v1743 = vrot.slane %v1738, %v1742
    %v1749 = vunpack.c.l.b16 %v1733
    %v1750 = vunpack.c.l.b16 %v1734
    %v1751 = vunpack.c.l.b16 %v1735
    %v1752 = vunpack.c.l.b16 %v1736
    %v1753 = vpack.c.b16 %v1750, %v1749
    %v1754 = vpack.c.b16 %v1752, %v1751
    %v1758 = vsel %vm58, %v1731, 0
    %1760 = vmatprep.subr.bf16.mxu0 0
    %1761 = vmatpush1.bf16.msra.mxu0 0
    %1762 = vmatprep.subr.bf16.mxu0 0
    %1763 = vmatpush1.bf16.msra.mxu0 0
    %1764 = vmatprep.subr.bf16.mxu0 0
    %1765 = vmatpush1.bf16.msra.mxu0 0
    %1766 = vmatprep.subr.bf16.mxu0 0
    %1767 = vmatpush1.bf16.msra.mxu0 0
    %1768 = vmatprep.subr.bf16.mxu0 0
    %1769 = vmatpush1.bf16.msra.mxu0 0
    %1770 = vmatprep.subr.bf16.mxu0 0
    %1771 = vmatpush1.bf16.msra.mxu0 0
    %1772 = vmatprep.subr.bf16.mxu0 0
    %1773 = vmatpush1.bf16.msra.mxu0 %v1754
    %1774 = vmatprep.subr.bf16.mxu0 0
    %1775 = vmatpush1.bf16.msra.mxu0 %v1753
    %1776 = vmatprep.subr.bf16.mxu0 0
    %1777 = vmatpush2.bf16.msra.mxu0 0
    %1778 = vmatprep.subr.bf16.mxu0 0
    %1779 = vmatpush2.bf16.msra.mxu0 0
    %1780 = vmatprep.subr.bf16.mxu0 0
    %1781 = vmatpush2.bf16.msra.mxu0 0
    %1782 = vmatprep.subr.bf16.mxu0 0
    %1783 = vmatpush2.bf16.msra.mxu0 0
    %1784 = vmatprep.subr.bf16.mxu0 0
    %1785 = vmatpush2.bf16.msra.mxu0 0
    %1786 = vmatprep.subr.bf16.mxu0 0
    %1787 = vmatpush2.bf16.msra.mxu0 0
    %1788 = vmatprep.subr.bf16.mxu0 0
    %1789 = vmatpush2.bf16.msra.mxu0 0
    %1790 = vmatprep.subr.bf16.mxu0 0
    %1791 = vmatpush2.bf16.msra.mxu0 0
    %1792 = vmatprep.mubr.bf16.mxu0 0
    %1793 = vmatmul.mubr.bf16.gmra.mxu0 %v1758
    %v1794 = vpop.f32.mrf.mxu0
    %v1795 = vadd.f32 %v1743, %v1794
    %v1796 = vpop.f32.mrf.mxu0
    %v1797 = vpop.f32.mrf.mxu0
    %v1798 = vadd.f32 %v1743, %v1797
    %v1799 = vpop.f32.mrf.mxu0
    %1800 = vdwg.mxu0
    %v1801 = vmul.f32 %v1795, 0.5
    %v1802 = vmul.f32 %v1798, 0.5
    %v1803 = vmul.f32 %v1795, 0.70710677
    %v1804 = vmul.f32 %v1798, 0.70710677
    %v1805 = verf.f32.pop %v1803
    %v1806 = verf.f32.pop %v1804
    %v1807 = vadd.f32 %v1805, 1.0
    %v1808 = vadd.f32 %v1806, 1.0
    %v1809 = vmul.f32 %v1801, %v1807
    %v1810 = vmul.f32 %v1802, %v1808
    %v1811 = vpack.c.bf16 %v1810, %v1809
    %s1812 = scalar_lea.vmem %s11, 32
    %v1813 = vld [vmem:[%s1812] sm:$0xf]
    %v1814 = vld [vmem:[%s1812 + $0x4] sm:$0xf]
    %v1815 = vld [vmem:[%s1812 + $0x8] sm:$0xf]
    %v1816 = vld [vmem:[%s1812 + $0xc] sm:$0xf]
    %v1817 = vld [vmem:[%s1812 + $0x10] sm:$0xf]
    %v1818 = vld [vmem:[%s1812 + $0x14] sm:$0xf]
    %v1819 = vld [vmem:[%s1812 + $0x18] sm:$0xf]
    %v1820 = vld [vmem:[%s1812 + $0x1c] sm:$0xf]
    %s1821 = scalar_lea.vmem %s12, 1
    %v1822 = vld [vmem:[%s1821] sm:$0x1]
    %v1824 = vlaneseq
    %v1825 = vshrl.u32 %v1824, 7
    %v1826 = vsub.s32 0, %v1825
    %v1827 = vrot.slane %v1822, %v1826
    %v1837 = vunpack.c.l.b16 %v1813
    %v1838 = vunpack.c.l.b16 %v1814
    %v1839 = vunpack.c.l.b16 %v1815
    %v1840 = vunpack.c.l.b16 %v1816
    %v1841 = vunpack.c.l.b16 %v1817
    %v1842 = vunpack.c.l.b16 %v1818
    %v1843 = vunpack.c.l.b16 %v1819
    %v1844 = vunpack.c.l.b16 %v1820
    %v1845 = vpack.c.b16 %v1838, %v1837
    %v1846 = vpack.c.b16 %v1840, %v1839
    %v1847 = vpack.c.b16 %v1842, %v1841
    %v1848 = vpack.c.b16 %v1844, %v1843
    %v1854 = vsel %vm928, %v1811, 0
    %1856 = vmatprep.subr.bf16.mxu0 0
    %1857 = vmatpush1.bf16.msra.mxu0 0
    %1858 = vmatprep.subr.bf16.mxu0 0
    %1859 = vmatpush1.bf16.msra.mxu0 0
    %1860 = vmatprep.subr.bf16.mxu0 0
    %1861 = vmatpush1.bf16.msra.mxu0 0
    %1862 = vmatprep.subr.bf16.mxu0 0
    %1863 = vmatpush1.bf16.msra.mxu0 0
    %1864 = vmatprep.subr.bf16.mxu0 0
    %1865 = vmatpush1.bf16.msra.mxu0 %v1848
    %1866 = vmatprep.subr.bf16.mxu0 0
    %1867 = vmatpush1.bf16.msra.mxu0 %v1847
    %1868 = vmatprep.subr.bf16.mxu0 0
    %1869 = vmatpush1.bf16.msra.mxu0 %v1846
    %1870 = vmatprep.subr.bf16.mxu0 0
    %1871 = vmatpush1.bf16.msra.mxu0 %v1845
    %1872 = vmatprep.subr.bf16.mxu0 0
    %1873 = vmatpush2.bf16.msra.mxu0 0
    %1874 = vmatprep.subr.bf16.mxu0 0
    %1875 = vmatpush2.bf16.msra.mxu0 0
    %1876 = vmatprep.subr.bf16.mxu0 0
    %1877 = vmatpush2.bf16.msra.mxu0 0
    %1878 = vmatprep.subr.bf16.mxu0 0
    %1879 = vmatpush2.bf16.msra.mxu0 0
    %1880 = vmatprep.subr.bf16.mxu0 0
    %1881 = vmatpush2.bf16.msra.mxu0 0
    %1882 = vmatprep.subr.bf16.mxu0 0
    %1883 = vmatpush2.bf16.msra.mxu0 0
    %1884 = vmatprep.subr.bf16.mxu0 0
    %1885 = vmatpush2.bf16.msra.mxu0 0
    %1886 = vmatprep.subr.bf16.mxu0 0
    %1887 = vmatpush2.bf16.msra.mxu0 0
    %1888 = vmatprep.mubr.bf16.mxu0 0
    %1889 = vmatmul.mubr.bf16.gmra.mxu0 %v1854
    %v1890 = vpop.f32.mrf.mxu0
    %v1891 = vadd.f32 %v1827, %v1890
    %v1892 = vpop.f32.mrf.mxu0
    %v1893 = vpop.f32.mrf.mxu0
    %v1894 = vadd.f32 %v1827, %v1893
    %v1895 = vpop.f32.mrf.mxu0
    %1896 = vdwg.mxu0
    %v1897 = vadd.f32 %v1891, %v1683
    %v1898 = vadd.f32 %v1894, %v1684
    %v1899 = vld [vmem:[%s13] sm:$0x1]
    %v1900 = vld [vmem:[%s14] sm:$0x1]
    %v1901 = vsel %vm58, %v1897, 0.0
    %1902 = vadd.xlane.f32.xlu0 %v1901
    %v1903 = vpop.xlane.xlu0 %1902
    %v1904 = vsel %vm58, %v1898, 0.0
    %1905 = vadd.xlane.f32.xlu0 %v1904
    %v1906 = vpop.xlane.xlu0 %1905
    %v1907 = vmul.f32 %v1903, %v65
    %v1908 = vmul.f32 %v1906, %v65
    %v1909 = vsub.f32 %v1897, %v1907
    %v1910 = vsub.f32 %v1898, %v1908
    %v1911 = vmul.f32 %v1909, %v1909
    %v1912 = vmul.f32 %v1910, %v1910
    %v1913 = vsel %vm58, %v1911, 0.0
    %1914 = vadd.xlane.f32.xlu0 %v1913
    %v1915 = vpop.xlane.xlu0 %1914
    %v1916 = vsel %vm58, %v1912, 0.0
    %1917 = vadd.xlane.f32.xlu0 %v1916
    %v1918 = vpop.xlane.xlu0 %1917
    %v1919 = vmul.f32 %v1915, %v65
    %v1920 = vmul.f32 %v1918, %v65
    %v1921 = vadd.f32 %v1919, 1e-05
    %v1922 = vadd.f32 %v1920, 1e-05
    %v1923 = vrsqrt.pop %v1921
    %v1924 = vrsqrt.pop %v1922
    %v1925 = vmul.f32 %v1909, %v1923
    %v1926 = vmul.f32 %v1910, %v1924
    %v1928 = vlaneseq
    %v1929 = vshrl.u32 %v1928, 7
    %v1930 = vsub.s32 0, %v1929
    %v1931 = vrot.slane %v1899, %v1930
    %v1933 = vmul.f32 %v1925, %v1931
    %v1934 = vmul.f32 %v1926, %v1931
    %v1936 = vlaneseq
    %v1937 = vshrl.u32 %v1936, 7
    %v1938 = vsub.s32 0, %v1937
    %v1939 = vrot.slane %v1900, %v1938
    %v1941 = vadd.f32 %v1933, %v1939
    %v1942 = vadd.f32 %v1934, %v1939
    %1943 = vst.msk [vmem:[#allocation2] sm:$0xff] %vm58, %v1941
    %1944 = vst.msk [vmem:[#allocation2 + $0x8] sm:$0xff] %vm58, %v1942
    // Predicated region
    $region62: #{transformer_forward.1} parent=1 // pred_check
      _
    $region63: #{transformer_forward.1} parent=1 // pred_check_branch
      %1946 = sbr.rel (0) target = $region65
    $region64: #{transformer_forward.1} parent=1 // pred_region
      %s1948 = ssub.s32 256, 256
      %1949 = vsyncadd [#allocation3], %s1948
      %s1950 = sshll.u32 [#allocation2], 4
      %s1951 = int_to_ptr.vmem [resolvable:$true] %s1950
      %1956 = dma.vmem_to_hbm [thread:$0]  %s1951, 256, %s15, [#allocation3], 128, 128, 8
    $region65: #{transformer_forward.1} parent=1 // pred_fallthru
      _
    // Predicated region
    $region66: #{transformer_forward.1} parent=1 // pred_check
      _
    $region67: #{transformer_forward.1} parent=1 // pred_check_branch
      %1958 = sbr.rel (0) target = $region69
    $region68: #{transformer_forward.1} parent=1 // pred_region
      %1959 = dma.done [#allocation3], 256
    $region69: #{transformer_forward.1} parent=1 // pred_fallthru
      _
    %1960 = vsyncpa [#allocation3], 1

</llo_original>
